<compile_context>
chip_gen: v7x
topology: tpu7x:2x2x1
jax: 0.10.0
libtpu: 0.0.40
codegen_flags: <defaults>
</compile_context>

<pallas_src>
import jax
import jax.numpy as jnp
from jax import lax
from jax.experimental import pallas as pl
from jax.experimental.pallas import tpu as pltpu

C_OUT = 12
K = 3
H_IN = 28
W_IN = 28
H_OUT = H_IN - K + 1   # 26
W_OUT = W_IN - K + 1   # 26


def conv_kernel(w_ref, b_ref, x_ref, out_ref):
    # w_ref:   (12, 9)        f32 SMEM  -> flattened 3x3 taps per out channel
    # b_ref:   (12,)          f32 SMEM  -> conv bias
    # x_ref:   (28, 28, B)    f32 VMEM  -> (H, W, batch-on-lanes)
    # out_ref: (12, 26, 26, B) f32 VMEM
    def row_body(i, carry):
        # The 9 shifted (W_OUT, B) input patches for output row i are shared by
        # all 12 output channels; load them once per row.
        patches = [
            x_ref[i + ki, pl.ds(kj, W_OUT), :]
            for ki in range(K)
            for kj in range(K)
        ]
        for c in range(C_OUT):
            acc = patches[0] * w_ref[c, 0]
            for t in range(1, K * K):
                acc = acc + patches[t] * w_ref[c, t]
            acc = acc + b_ref[c]
            out_ref[c, i, :, :] = acc.astype(out_ref.dtype)
        return carry

    lax.fori_loop(0, H_OUT, row_body, 0)


def net_forward(x, weight, bias, *, b_tile=128):
    """x: (N, 1, 28, 28) f32; weight: (12, 1, 3, 3); bias: (12,).

    Returns (conv_out, flattened) matching PyTorch Net.forward:
      conv_out:  (N, 12, 26, 26)
      flattened: (N, 12*26*26)
    """
    n = x.shape[0]
    n_blocks = pl.cdiv(n, b_tile)
    n_pad = n_blocks * b_tile

    # (N, 1, 28, 28) -> (28, 28, N_pad): batch on the lane dimension.
    x_hw_n = jnp.transpose(x[:, 0, :, :], (1, 2, 0))
    if n_pad != n:
        x_hw_n = jnp.pad(x_hw_n, ((0, 0), (0, 0), (0, n_pad - n)))

    w_flat = weight.reshape(C_OUT, K * K).astype(jnp.float32)
    b_vec = bias.astype(jnp.float32)

    out_t = pl.pallas_call(
        conv_kernel,
        out_shape=jax.ShapeDtypeStruct((C_OUT, H_OUT, W_OUT, n_pad),
                                       jnp.float32),
        grid_spec=pltpu.PrefetchScalarGridSpec(
            num_scalar_prefetch=0,
            grid=(n_blocks,),
            in_specs=[
                pl.BlockSpec(memory_space=pltpu.MemorySpace.SMEM),  # weights
                pl.BlockSpec(memory_space=pltpu.MemorySpace.SMEM),  # bias
                pl.BlockSpec((H_IN, W_IN, b_tile), lambda i: (0, 0, i)),
            ],
            out_specs=pl.BlockSpec((C_OUT, H_OUT, W_OUT, b_tile),
                                   lambda i: (0, 0, 0, i)),
        ),
        compiler_params=pltpu.CompilerParams(
            dimension_semantics=("parallel",)),
    )(w_flat, b_vec, x_hw_n)

    # Back to NCHW; drop batch padding.
    conv_out = jnp.transpose(out_t, (3, 0, 1, 2))[:n]
    flattened = conv_out.reshape(-1, C_OUT * H_OUT * W_OUT)
    return conv_out, flattened


def _reference_conv(x, weight, bias):
    # Pure-JAX reference (NCHW valid conv) for correctness checking.
    out = jax.lax.conv_general_dilated(
        x, weight, window_strides=(1, 1), padding="VALID",
        dimension_numbers=("NCHW", "OIHW", "NCHW"))
    return out + bias[None, :, None, None]


if __name__ == "__main__":
    key = jax.random.PRNGKey(0)
    k_x, k_w, k_b = jax.random.split(key, 3)

    batch = 2
    x = jax.random.normal(k_x, (batch, 1, H_IN, W_IN), dtype=jnp.float32)

    # Deterministic synthetic "gabor_filters": (12, 3, 3) -> [:, None, :] -> (12, 1, 3, 3)
    gabor_filters = jax.random.normal(k_w, (C_OUT, K, K), dtype=jnp.float32)
    weight = gabor_filters[:, None, :, :]
    # Conv bias (PyTorch Conv2d default has a bias term of shape (12,)).
    bias = 0.1 * jax.random.normal(k_b, (C_OUT,), dtype=jnp.float32)

    conv_out, flattened = net_forward(x, weight, bias)
    jax.block_until_ready(conv_out)
    jax.block_until_ready(flattened)

    ref = _reference_conv(x, weight, bias)
    assert conv_out.shape == (batch, C_OUT, H_OUT, W_OUT)
    assert flattened.shape == (batch, C_OUT * H_OUT * W_OUT)
    assert jnp.allclose(conv_out, ref, atol=1e-4, rtol=1e-4)
    assert jnp.allclose(flattened, ref.reshape(-1, C_OUT * H_OUT * W_OUT),
                        atol=1e-4, rtol=1e-4)

    print("KERNEL_OK")
</pallas_src>

<mosaic_0001>
module attributes {stable_mosaic.version = 11 : i64} {
  func.func @conv_kernel(%arg0: i32, %arg1: memref<12x9xf32, #tpu.memory_space<smem>>, %arg2: memref<12xf32, #tpu.memory_space<smem>>, %arg3: memref<28x28x128xf32, #tpu.memory_space<vmem>>, %arg4: memref<12x26x26x128xf32, #tpu.memory_space<vmem>>) attributes {dimension_semantics = [#tpu.dimension_semantics<parallel>], iteration_bounds = array<i64: 1>, scalar_prefetch = 0 : i64, scratch_operands = 0 : i64, tpu.core_type = #tpu.core_type<tc>, window_params = [{transform_indices = @transform_0, window_bounds = array<i64: 12, 9>}, {transform_indices = @transform_1, window_bounds = array<i64: 12>}, {transform_indices = @transform_2, window_bounds = array<i64: 28, 28, 128>}, {transform_indices = @transform_3, window_bounds = array<i64: 12, 26, 26, 128>}]} {
    %c0_i32 = arith.constant 0 : i32
    %c26_i32 = arith.constant 26 : i32
    %0 = arith.addi %c0_i32, %c26_i32 : i32
    %c1_i32 = arith.constant 1 : i32
    scf.for %arg5 = %c0_i32 to %0 step %c1_i32  : i32 {
      %c0_i32_1 = arith.constant 0 : i32
      %1 = arith.addi %arg5, %c0_i32_1 : i32
      %2 = arith.index_cast %1 : i32 to index
      %c0 = arith.constant 0 : index
      %c0_2 = arith.constant 0 : index
      %3 = vector.load %arg3[%2, %c0, %c0_2] : memref<28x28x128xf32, #tpu.memory_space<vmem>>, vector<1x26x128xf32>
      %4 = vector.shape_cast %3 : vector<1x26x128xf32> to vector<26x128xf32>
      %c0_i32_3 = arith.constant 0 : i32
      %5 = arith.addi %arg5, %c0_i32_3 : i32
      %6 = arith.index_cast %5 : i32 to index
      %c1 = arith.constant 1 : index
      %c0_4 = arith.constant 0 : index
      %7 = vector.load %arg3[%6, %c1, %c0_4] : memref<28x28x128xf32, #tpu.memory_space<vmem>>, vector<1x26x128xf32>
      %8 = vector.shape_cast %7 : vector<1x26x128xf32> to vector<26x128xf32>
      %c0_i32_5 = arith.constant 0 : i32
      %9 = arith.addi %arg5, %c0_i32_5 : i32
      %10 = arith.index_cast %9 : i32 to index
      %c2 = arith.constant 2 : index
      %c0_6 = arith.constant 0 : index
      %11 = vector.load %arg3[%10, %c2, %c0_6] : memref<28x28x128xf32, #tpu.memory_space<vmem>>, vector<1x26x128xf32>
      %12 = vector.shape_cast %11 : vector<1x26x128xf32> to vector<26x128xf32>
      %c1_i32_7 = arith.constant 1 : i32
      %13 = arith.addi %arg5, %c1_i32_7 : i32
      %14 = arith.index_cast %13 : i32 to index
      %c0_8 = arith.constant 0 : index
      %c0_9 = arith.constant 0 : index
      %15 = vector.load %arg3[%14, %c0_8, %c0_9] : memref<28x28x128xf32, #tpu.memory_space<vmem>>, vector<1x26x128xf32>
      %16 = vector.shape_cast %15 : vector<1x26x128xf32> to vector<26x128xf32>
      %c1_i32_10 = arith.constant 1 : i32
      %17 = arith.addi %arg5, %c1_i32_10 : i32
      %18 = arith.index_cast %17 : i32 to index
      %c1_11 = arith.constant 1 : index
      %c0_12 = arith.constant 0 : index
      %19 = vector.load %arg3[%18, %c1_11, %c0_12] : memref<28x28x128xf32, #tpu.memory_space<vmem>>, vector<1x26x128xf32>
      %20 = vector.shape_cast %19 : vector<1x26x128xf32> to vector<26x128xf32>
      %c1_i32_13 = arith.constant 1 : i32
      %21 = arith.addi %arg5, %c1_i32_13 : i32
      %22 = arith.index_cast %21 : i32 to index
      %c2_14 = arith.constant 2 : index
      %c0_15 = arith.constant 0 : index
      %23 = vector.load %arg3[%22, %c2_14, %c0_15] : memref<28x28x128xf32, #tpu.memory_space<vmem>>, vector<1x26x128xf32>
      %24 = vector.shape_cast %23 : vector<1x26x128xf32> to vector<26x128xf32>
      %c2_i32 = arith.constant 2 : i32
      %25 = arith.addi %arg5, %c2_i32 : i32
      %26 = arith.index_cast %25 : i32 to index
      %c0_16 = arith.constant 0 : index
      %c0_17 = arith.constant 0 : index
      %27 = vector.load %arg3[%26, %c0_16, %c0_17] : memref<28x28x128xf32, #tpu.memory_space<vmem>>, vector<1x26x128xf32>
      %28 = vector.shape_cast %27 : vector<1x26x128xf32> to vector<26x128xf32>
      %c2_i32_18 = arith.constant 2 : i32
      %29 = arith.addi %arg5, %c2_i32_18 : i32
      %30 = arith.index_cast %29 : i32 to index
      %c1_19 = arith.constant 1 : index
      %c0_20 = arith.constant 0 : index
      %31 = vector.load %arg3[%30, %c1_19, %c0_20] : memref<28x28x128xf32, #tpu.memory_space<vmem>>, vector<1x26x128xf32>
      %32 = vector.shape_cast %31 : vector<1x26x128xf32> to vector<26x128xf32>
      %c2_i32_21 = arith.constant 2 : i32
      %33 = arith.addi %arg5, %c2_i32_21 : i32
      %34 = arith.index_cast %33 : i32 to index
      %c2_22 = arith.constant 2 : index
      %c0_23 = arith.constant 0 : index
      %35 = vector.load %arg3[%34, %c2_22, %c0_23] : memref<28x28x128xf32, #tpu.memory_space<vmem>>, vector<1x26x128xf32>
      %36 = vector.shape_cast %35 : vector<1x26x128xf32> to vector<26x128xf32>
      %c0_24 = arith.constant 0 : index
      %c0_25 = arith.constant 0 : index
      %37 = memref.load %arg1[%c0_24, %c0_25] : memref<12x9xf32, #tpu.memory_space<smem>>
      %38 = vector.broadcast %37 : f32 to vector<26x128xf32>
      %39 = arith.mulf %4, %38 : vector<26x128xf32>
      %c0_26 = arith.constant 0 : index
      %c1_27 = arith.constant 1 : index
      %40 = memref.load %arg1[%c0_26, %c1_27] : memref<12x9xf32, #tpu.memory_space<smem>>
      %41 = vector.broadcast %40 : f32 to vector<26x128xf32>
      %42 = arith.mulf %8, %41 : vector<26x128xf32>
      %43 = arith.addf %39, %42 : vector<26x128xf32>
      %c0_28 = arith.constant 0 : index
      %c2_29 = arith.constant 2 : index
      %44 = memref.load %arg1[%c0_28, %c2_29] : memref<12x9xf32, #tpu.memory_space<smem>>
      %45 = vector.broadcast %44 : f32 to vector<26x128xf32>
      %46 = arith.mulf %12, %45 : vector<26x128xf32>
      %47 = arith.addf %43, %46 : vector<26x128xf32>
      %c0_30 = arith.constant 0 : index
      %c3 = arith.constant 3 : index
      %48 = memref.load %arg1[%c0_30, %c3] : memref<12x9xf32, #tpu.memory_space<smem>>
      %49 = vector.broadcast %48 : f32 to vector<26x128xf32>
      %50 = arith.mulf %16, %49 : vector<26x128xf32>
      %51 = arith.addf %47, %50 : vector<26x128xf32>
      %c0_31 = arith.constant 0 : index
      %c4 = arith.constant 4 : index
      %52 = memref.load %arg1[%c0_31, %c4] : memref<12x9xf32, #tpu.memory_space<smem>>
      %53 = vector.broadcast %52 : f32 to vector<26x128xf32>
      %54 = arith.mulf %20, %53 : vector<26x128xf32>
      %55 = arith.addf %51, %54 : vector<26x128xf32>
      %c0_32 = arith.constant 0 : index
      %c5 = arith.constant 5 : index
      %56 = memref.load %arg1[%c0_32, %c5] : memref<12x9xf32, #tpu.memory_space<smem>>
      %57 = vector.broadcast %56 : f32 to vector<26x128xf32>
      %58 = arith.mulf %24, %57 : vector<26x128xf32>
      %59 = arith.addf %55, %58 : vector<26x128xf32>
      %c0_33 = arith.constant 0 : index
      %c6 = arith.constant 6 : index
      %60 = memref.load %arg1[%c0_33, %c6] : memref<12x9xf32, #tpu.memory_space<smem>>
      %61 = vector.broadcast %60 : f32 to vector<26x128xf32>
      %62 = arith.mulf %28, %61 : vector<26x128xf32>
      %63 = arith.addf %59, %62 : vector<26x128xf32>
      %c0_34 = arith.constant 0 : index
      %c7 = arith.constant 7 : index
      %64 = memref.load %arg1[%c0_34, %c7] : memref<12x9xf32, #tpu.memory_space<smem>>
      %65 = vector.broadcast %64 : f32 to vector<26x128xf32>
      %66 = arith.mulf %32, %65 : vector<26x128xf32>
      %67 = arith.addf %63, %66 : vector<26x128xf32>
      %c0_35 = arith.constant 0 : index
      %c8 = arith.constant 8 : index
      %68 = memref.load %arg1[%c0_35, %c8] : memref<12x9xf32, #tpu.memory_space<smem>>
      %69 = vector.broadcast %68 : f32 to vector<26x128xf32>
      %70 = arith.mulf %36, %69 : vector<26x128xf32>
      %71 = arith.addf %67, %70 : vector<26x128xf32>
      %c0_36 = arith.constant 0 : index
      %72 = memref.load %arg2[%c0_36] : memref<12xf32, #tpu.memory_space<smem>>
      %73 = vector.broadcast %72 : f32 to vector<26x128xf32>
      %74 = arith.addf %71, %73 : vector<26x128xf32>
      %c0_37 = arith.constant 0 : index
      %75 = arith.index_cast %arg5 : i32 to index
      %c0_38 = arith.constant 0 : index
      %c0_39 = arith.constant 0 : index
      %76 = vector.load %arg4[%c0_37, %75, %c0_38, %c0_39] : memref<12x26x26x128xf32, #tpu.memory_space<vmem>>, vector<1x1x26x128xf32>
      %77 = vector.shape_cast %76 : vector<1x1x26x128xf32> to vector<26x128xf32>
      %78 = vector.shape_cast %74 : vector<26x128xf32> to vector<1x1x26x128xf32>
      tpu.vector_store %arg4[%c0_37, %75, %c0_38, %c0_39], %78 {strides = array<i32>} : memref<12x26x26x128xf32, #tpu.memory_space<vmem>>, vector<1x1x26x128xf32>,
      %c1_40 = arith.constant 1 : index
      %c0_41 = arith.constant 0 : index
      %79 = memref.load %arg1[%c1_40, %c0_41] : memref<12x9xf32, #tpu.memory_space<smem>>
      %80 = vector.broadcast %79 : f32 to vector<26x128xf32>
      %81 = arith.mulf %4, %80 : vector<26x128xf32>
      %c1_42 = arith.constant 1 : index
      %c1_43 = arith.constant 1 : index
      %82 = memref.load %arg1[%c1_42, %c1_43] : memref<12x9xf32, #tpu.memory_space<smem>>
      %83 = vector.broadcast %82 : f32 to vector<26x128xf32>
      %84 = arith.mulf %8, %83 : vector<26x128xf32>
      %85 = arith.addf %81, %84 : vector<26x128xf32>
      %c1_44 = arith.constant 1 : index
      %c2_45 = arith.constant 2 : index
      %86 = memref.load %arg1[%c1_44, %c2_45] : memref<12x9xf32, #tpu.memory_space<smem>>
      %87 = vector.broadcast %86 : f32 to vector<26x128xf32>
      %88 = arith.mulf %12, %87 : vector<26x128xf32>
      %89 = arith.addf %85, %88 : vector<26x128xf32>
      %c1_46 = arith.constant 1 : index
      %c3_47 = arith.constant 3 : index
      %90 = memref.load %arg1[%c1_46, %c3_47] : memref<12x9xf32, #tpu.memory_space<smem>>
      %91 = vector.broadcast %90 : f32 to vector<26x128xf32>
      %92 = arith.mulf %16, %91 : vector<26x128xf32>
      %93 = arith.addf %89, %92 : vector<26x128xf32>
      %c1_48 = arith.constant 1 : index
      %c4_49 = arith.constant 4 : index
      %94 = memref.load %arg1[%c1_48, %c4_49] : memref<12x9xf32, #tpu.memory_space<smem>>
      %95 = vector.broadcast %94 : f32 to vector<26x128xf32>
      %96 = arith.mulf %20, %95 : vector<26x128xf32>
      %97 = arith.addf %93, %96 : vector<26x128xf32>
      %c1_50 = arith.constant 1 : index
      %c5_51 = arith.constant 5 : index
      %98 = memref.load %arg1[%c1_50, %c5_51] : memref<12x9xf32, #tpu.memory_space<smem>>
      %99 = vector.broadcast %98 : f32 to vector<26x128xf32>
      %100 = arith.mulf %24, %99 : vector<26x128xf32>
      %101 = arith.addf %97, %100 : vector<26x128xf32>
      %c1_52 = arith.constant 1 : index
      %c6_53 = arith.constant 6 : index
      %102 = memref.load %arg1[%c1_52, %c6_53] : memref<12x9xf32, #tpu.memory_space<smem>>
      %103 = vector.broadcast %102 : f32 to vector<26x128xf32>
      %104 = arith.mulf %28, %103 : vector<26x128xf32>
      %105 = arith.addf %101, %104 : vector<26x128xf32>
      %c1_54 = arith.constant 1 : index
      %c7_55 = arith.constant 7 : index
      %106 = memref.load %arg1[%c1_54, %c7_55] : memref<12x9xf32, #tpu.memory_space<smem>>
      %107 = vector.broadcast %106 : f32 to vector<26x128xf32>
      %108 = arith.mulf %32, %107 : vector<26x128xf32>
      %109 = arith.addf %105, %108 : vector<26x128xf32>
      %c1_56 = arith.constant 1 : index
      %c8_57 = arith.constant 8 : index
      %110 = memref.load %arg1[%c1_56, %c8_57] : memref<12x9xf32, #tpu.memory_space<smem>>
      %111 = vector.broadcast %110 : f32 to vector<26x128xf32>
      %112 = arith.mulf %36, %111 : vector<26x128xf32>
      %113 = arith.addf %109, %112 : vector<26x128xf32>
      %c1_58 = arith.constant 1 : index
      %114 = memref.load %arg2[%c1_58] : memref<12xf32, #tpu.memory_space<smem>>
      %115 = vector.broadcast %114 : f32 to vector<26x128xf32>
      %116 = arith.addf %113, %115 : vector<26x128xf32>
      %c1_59 = arith.constant 1 : index
      %117 = arith.index_cast %arg5 : i32 to index
      %c0_60 = arith.constant 0 : index
      %c0_61 = arith.constant 0 : index
      %118 = vector.load %arg4[%c1_59, %117, %c0_60, %c0_61] : memref<12x26x26x128xf32, #tpu.memory_space<vmem>>, vector<1x1x26x128xf32>
      %119 = vector.shape_cast %118 : vector<1x1x26x128xf32> to vector<26x128xf32>
      %120 = vector.shape_cast %116 : vector<26x128xf32> to vector<1x1x26x128xf32>
      tpu.vector_store %arg4[%c1_59, %117, %c0_60, %c0_61], %120 {strides = array<i32>} : memref<12x26x26x128xf32, #tpu.memory_space<vmem>>, vector<1x1x26x128xf32>,
      %c2_62 = arith.constant 2 : index
      %c0_63 = arith.constant 0 : index
      %121 = memref.load %arg1[%c2_62, %c0_63] : memref<12x9xf32, #tpu.memory_space<smem>>
      %122 = vector.broadcast %121 : f32 to vector<26x128xf32>
      %123 = arith.mulf %4, %122 : vector<26x128xf32>
      %c2_64 = arith.constant 2 : index
      %c1_65 = arith.constant 1 : index
      %124 = memref.load %arg1[%c2_64, %c1_65] : memref<12x9xf32, #tpu.memory_space<smem>>
      %125 = vector.broadcast %124 : f32 to vector<26x128xf32>
      %126 = arith.mulf %8, %125 : vector<26x128xf32>
      %127 = arith.addf %123, %126 : vector<26x128xf32>
      %c2_66 = arith.constant 2 : index
      %c2_67 = arith.constant 2 : index
      %128 = memref.load %arg1[%c2_66, %c2_67] : memref<12x9xf32, #tpu.memory_space<smem>>
      %129 = vector.broadcast %128 : f32 to vector<26x128xf32>
      %130 = arith.mulf %12, %129 : vector<26x128xf32>
      %131 = arith.addf %127, %130 : vector<26x128xf32>
      %c2_68 = arith.constant 2 : index
      %c3_69 = arith.constant 3 : index
      %132 = memref.load %arg1[%c2_68, %c3_69] : memref<12x9xf32, #tpu.memory_space<smem>>
      %133 = vector.broadcast %132 : f32 to vector<26x128xf32>
      %134 = arith.mulf %16, %133 : vector<26x128xf32>
      %135 = arith.addf %131, %134 : vector<26x128xf32>
      %c2_70 = arith.constant 2 : index
      %c4_71 = arith.constant 4 : index
      %136 = memref.load %arg1[%c2_70, %c4_71] : memref<12x9xf32, #tpu.memory_space<smem>>
      %137 = vector.broadcast %136 : f32 to vector<26x128xf32>
      %138 = arith.mulf %20, %137 : vector<26x128xf32>
      %139 = arith.addf %135, %138 : vector<26x128xf32>
      %c2_72 = arith.constant 2 : index
      %c5_73 = arith.constant 5 : index
      %140 = memref.load %arg1[%c2_72, %c5_73] : memref<12x9xf32, #tpu.memory_space<smem>>
      %141 = vector.broadcast %140 : f32 to vector<26x128xf32>
      %142 = arith.mulf %24, %141 : vector<26x128xf32>
      %143 = arith.addf %139, %142 : vector<26x128xf32>
      %c2_74 = arith.constant 2 : index
      %c6_75 = arith.constant 6 : index
      %144 = memref.load %arg1[%c2_74, %c6_75] : memref<12x9xf32, #tpu.memory_space<smem>>
      %145 = vector.broadcast %144 : f32 to vector<26x128xf32>
      %146 = arith.mulf %28, %145 : vector<26x128xf32>
      %147 = arith.addf %143, %146 : vector<26x128xf32>
      %c2_76 = arith.constant 2 : index
      %c7_77 = arith.constant 7 : index
      %148 = memref.load %arg1[%c2_76, %c7_77] : memref<12x9xf32, #tpu.memory_space<smem>>
      %149 = vector.broadcast %148 : f32 to vector<26x128xf32>
      %150 = arith.mulf %32, %149 : vector<26x128xf32>
      %151 = arith.addf %147, %150 : vector<26x128xf32>
      %c2_78 = arith.constant 2 : index
      %c8_79 = arith.constant 8 : index
      %152 = memref.load %arg1[%c2_78, %c8_79] : memref<12x9xf32, #tpu.memory_space<smem>>
      %153 = vector.broadcast %152 : f32 to vector<26x128xf32>
      %154 = arith.mulf %36, %153 : vector<26x128xf32>
      %155 = arith.addf %151, %154 : vector<26x128xf32>
      %c2_80 = arith.constant 2 : index
      %156 = memref.load %arg2[%c2_80] : memref<12xf32, #tpu.memory_space<smem>>
      %157 = vector.broadcast %156 : f32 to vector<26x128xf32>
      %158 = arith.addf %155, %157 : vector<26x128xf32>
      %c2_81 = arith.constant 2 : index
      %159 = arith.index_cast %arg5 : i32 to index
      %c0_82 = arith.constant 0 : index
      %c0_83 = arith.constant 0 : index
      %160 = vector.load %arg4[%c2_81, %159, %c0_82, %c0_83] : memref<12x26x26x128xf32, #tpu.memory_space<vmem>>, vector<1x1x26x128xf32>
      %161 = vector.shape_cast %160 : vector<1x1x26x128xf32> to vector<26x128xf32>
      %162 = vector.shape_cast %158 : vector<26x128xf32> to vector<1x1x26x128xf32>
      tpu.vector_store %arg4[%c2_81, %159, %c0_82, %c0_83], %162 {strides = array<i32>} : memref<12x26x26x128xf32, #tpu.memory_space<vmem>>, vector<1x1x26x128xf32>,
      %c3_84 = arith.constant 3 : index
      %c0_85 = arith.constant 0 : index
      %163 = memref.load %arg1[%c3_84, %c0_85] : memref<12x9xf32, #tpu.memory_space<smem>>
      %164 = vector.broadcast %163 : f32 to vector<26x128xf32>
      %165 = arith.mulf %4, %164 : vector<26x128xf32>
      %c3_86 = arith.constant 3 : index
      %c1_87 = arith.constant 1 : index
      %166 = memref.load %arg1[%c3_86, %c1_87] : memref<12x9xf32, #tpu.memory_space<smem>>
      %167 = vector.broadcast %166 : f32 to vector<26x128xf32>
      %168 = arith.mulf %8, %167 : vector<26x128xf32>
      %169 = arith.addf %165, %168 : vector<26x128xf32>
      %c3_88 = arith.constant 3 : index
      %c2_89 = arith.constant 2 : index
      %170 = memref.load %arg1[%c3_88, %c2_89] : memref<12x9xf32, #tpu.memory_space<smem>>
      %171 = vector.broadcast %170 : f32 to vector<26x128xf32>
      %172 = arith.mulf %12, %171 : vector<26x128xf32>
      %173 = arith.addf %169, %172 : vector<26x128xf32>
      %c3_90 = arith.constant 3 : index
      %c3_91 = arith.constant 3 : index
      %174 = memref.load %arg1[%c3_90, %c3_91] : memref<12x9xf32, #tpu.memory_space<smem>>
      %175 = vector.broadcast %174 : f32 to vector<26x128xf32>
      %176 = arith.mulf %16, %175 : vector<26x128xf32>
      %177 = arith.addf %173, %176 : vector<26x128xf32>
      %c3_92 = arith.constant 3 : index
      %c4_93 = arith.constant 4 : index
      %178 = memref.load %arg1[%c3_92, %c4_93] : memref<12x9xf32, #tpu.memory_space<smem>>
      %179 = vector.broadcast %178 : f32 to vector<26x128xf32>
      %180 = arith.mulf %20, %179 : vector<26x128xf32>
      %181 = arith.addf %177, %180 : vector<26x128xf32>
      %c3_94 = arith.constant 3 : index
      %c5_95 = arith.constant 5 : index
      %182 = memref.load %arg1[%c3_94, %c5_95] : memref<12x9xf32, #tpu.memory_space<smem>>
      %183 = vector.broadcast %182 : f32 to vector<26x128xf32>
      %184 = arith.mulf %24, %183 : vector<26x128xf32>
      %185 = arith.addf %181, %184 : vector<26x128xf32>
      %c3_96 = arith.constant 3 : index
      %c6_97 = arith.constant 6 : index
      %186 = memref.load %arg1[%c3_96, %c6_97] : memref<12x9xf32, #tpu.memory_space<smem>>
      %187 = vector.broadcast %186 : f32 to vector<26x128xf32>
      %188 = arith.mulf %28, %187 : vector<26x128xf32>
      %189 = arith.addf %185, %188 : vector<26x128xf32>
      %c3_98 = arith.constant 3 : index
      %c7_99 = arith.constant 7 : index
      %190 = memref.load %arg1[%c3_98, %c7_99] : memref<12x9xf32, #tpu.memory_space<smem>>
      %191 = vector.broadcast %190 : f32 to vector<26x128xf32>
      %192 = arith.mulf %32, %191 : vector<26x128xf32>
      %193 = arith.addf %189, %192 : vector<26x128xf32>
      %c3_100 = arith.constant 3 : index
      %c8_101 = arith.constant 8 : index
      %194 = memref.load %arg1[%c3_100, %c8_101] : memref<12x9xf32, #tpu.memory_space<smem>>
      %195 = vector.broadcast %194 : f32 to vector<26x128xf32>
      %196 = arith.mulf %36, %195 : vector<26x128xf32>
      %197 = arith.addf %193, %196 : vector<26x128xf32>
      %c3_102 = arith.constant 3 : index
      %198 = memref.load %arg2[%c3_102] : memref<12xf32, #tpu.memory_space<smem>>
      %199 = vector.broadcast %198 : f32 to vector<26x128xf32>
      %200 = arith.addf %197, %199 : vector<26x128xf32>
      %c3_103 = arith.constant 3 : index
      %201 = arith.index_cast %arg5 : i32 to index
      %c0_104 = arith.constant 0 : index
      %c0_105 = arith.constant 0 : index
      %202 = vector.load %arg4[%c3_103, %201, %c0_104, %c0_105] : memref<12x26x26x128xf32, #tpu.memory_space<vmem>>, vector<1x1x26x128xf32>
      %203 = vector.shape_cast %202 : vector<1x1x26x128xf32> to vector<26x128xf32>
      %204 = vector.shape_cast %200 : vector<26x128xf32> to vector<1x1x26x128xf32>
      tpu.vector_store %arg4[%c3_103, %201, %c0_104, %c0_105], %204 {strides = array<i32>} : memref<12x26x26x128xf32, #tpu.memory_space<vmem>>, vector<1x1x26x128xf32>,
      %c4_106 = arith.constant 4 : index
      %c0_107 = arith.constant 0 : index
      %205 = memref.load %arg1[%c4_106, %c0_107] : memref<12x9xf32, #tpu.memory_space<smem>>
      %206 = vector.broadcast %205 : f32 to vector<26x128xf32>
      %207 = arith.mulf %4, %206 : vector<26x128xf32>
      %c4_108 = arith.constant 4 : index
      %c1_109 = arith.constant 1 : index
      %208 = memref.load %arg1[%c4_108, %c1_109] : memref<12x9xf32, #tpu.memory_space<smem>>
      %209 = vector.broadcast %208 : f32 to vector<26x128xf32>
      %210 = arith.mulf %8, %209 : vector<26x128xf32>
      %211 = arith.addf %207, %210 : vector<26x128xf32>
      %c4_110 = arith.constant 4 : index
      %c2_111 = arith.constant 2 : index
      %212 = memref.load %arg1[%c4_110, %c2_111] : memref<12x9xf32, #tpu.memory_space<smem>>
      %213 = vector.broadcast %212 : f32 to vector<26x128xf32>
      %214 = arith.mulf %12, %213 : vector<26x128xf32>
      %215 = arith.addf %211, %214 : vector<26x128xf32>
      %c4_112 = arith.constant 4 : index
      %c3_113 = arith.constant 3 : index
      %216 = memref.load %arg1[%c4_112, %c3_113] : memref<12x9xf32, #tpu.memory_space<smem>>
      %217 = vector.broadcast %216 : f32 to vector<26x128xf32>
      %218 = arith.mulf %16, %217 : vector<26x128xf32>
      %219 = arith.addf %215, %218 : vector<26x128xf32>
      %c4_114 = arith.constant 4 : index
      %c4_115 = arith.constant 4 : index
      %220 = memref.load %arg1[%c4_114, %c4_115] : memref<12x9xf32, #tpu.memory_space<smem>>
      %221 = vector.broadcast %220 : f32 to vector<26x128xf32>
      %222 = arith.mulf %20, %221 : vector<26x128xf32>
      %223 = arith.addf %219, %222 : vector<26x128xf32>
      %c4_116 = arith.constant 4 : index
      %c5_117 = arith.constant 5 : index
      %224 = memref.load %arg1[%c4_116, %c5_117] : memref<12x9xf32, #tpu.memory_space<smem>>
      %225 = vector.broadcast %224 : f32 to vector<26x128xf32>
      %226 = arith.mulf %24, %225 : vector<26x128xf32>
      %227 = arith.addf %223, %226 : vector<26x128xf32>
      %c4_118 = arith.constant 4 : index
      %c6_119 = arith.constant 6 : index
      %228 = memref.load %arg1[%c4_118, %c6_119] : memref<12x9xf32, #tpu.memory_space<smem>>
      %229 = vector.broadcast %228 : f32 to vector<26x128xf32>
      %230 = arith.mulf %28, %229 : vector<26x128xf32>
      %231 = arith.addf %227, %230 : vector<26x128xf32>
      %c4_120 = arith.constant 4 : index
      %c7_121 = arith.constant 7 : index
      %232 = memref.load %arg1[%c4_120, %c7_121] : memref<12x9xf32, #tpu.memory_space<smem>>
      %233 = vector.broadcast %232 : f32 to vector<26x128xf32>
      %234 = arith.mulf %32, %233 : vector<26x128xf32>
      %235 = arith.addf %231, %234 : vector<26x128xf32>
      %c4_122 = arith.constant 4 : index
      %c8_123 = arith.constant 8 : index
      %236 = memref.load %arg1[%c4_122, %c8_123] : memref<12x9xf32, #tpu.memory_space<smem>>
      %237 = vector.broadcast %236 : f32 to vector<26x128xf32>
      %238 = arith.mulf %36, %237 : vector<26x128xf32>
      %239 = arith.addf %235, %238 : vector<26x128xf32>
      %c4_124 = arith.constant 4 : index
      %240 = memref.load %arg2[%c4_124] : memref<12xf32, #tpu.memory_space<smem>>
      %241 = vector.broadcast %240 : f32 to vector<26x128xf32>
      %242 = arith.addf %239, %241 : vector<26x128xf32>
      %c4_125 = arith.constant 4 : index
      %243 = arith.index_cast %arg5 : i32 to index
      %c0_126 = arith.constant 0 : index
      %c0_127 = arith.constant 0 : index
      %244 = vector.load %arg4[%c4_125, %243, %c0_126, %c0_127] : memref<12x26x26x128xf32, #tpu.memory_space<vmem>>, vector<1x1x26x128xf32>
      %245 = vector.shape_cast %244 : vector<1x1x26x128xf32> to vector<26x128xf32>
      %246 = vector.shape_cast %242 : vector<26x128xf32> to vector<1x1x26x128xf32>
      tpu.vector_store %arg4[%c4_125, %243, %c0_126, %c0_127], %246 {strides = array<i32>} : memref<12x26x26x128xf32, #tpu.memory_space<vmem>>, vector<1x1x26x128xf32>,
      %c5_128 = arith.constant 5 : index
      %c0_129 = arith.constant 0 : index
      %247 = memref.load %arg1[%c5_128, %c0_129] : memref<12x9xf32, #tpu.memory_space<smem>>
      %248 = vector.broadcast %247 : f32 to vector<26x128xf32>
      %249 = arith.mulf %4, %248 : vector<26x128xf32>
      %c5_130 = arith.constant 5 : index
      %c1_131 = arith.constant 1 : index
      %250 = memref.load %arg1[%c5_130, %c1_131] : memref<12x9xf32, #tpu.memory_space<smem>>
      %251 = vector.broadcast %250 : f32 to vector<26x128xf32>
      %252 = arith.mulf %8, %251 : vector<26x128xf32>
      %253 = arith.addf %249, %252 : vector<26x128xf32>
      %c5_132 = arith.constant 5 : index
      %c2_133 = arith.constant 2 : index
      %254 = memref.load %arg1[%c5_132, %c2_133] : memref<12x9xf32, #tpu.memory_space<smem>>
      %255 = vector.broadcast %254 : f32 to vector<26x128xf32>
      %256 = arith.mulf %12, %255 : vector<26x128xf32>
      %257 = arith.addf %253, %256 : vector<26x128xf32>
      %c5_134 = arith.constant 5 : index
      %c3_135 = arith.constant 3 : index
      %258 = memref.load %arg1[%c5_134, %c3_135] : memref<12x9xf32, #tpu.memory_space<smem>>
      %259 = vector.broadcast %258 : f32 to vector<26x128xf32>
      %260 = arith.mulf %16, %259 : vector<26x128xf32>
      %261 = arith.addf %257, %260 : vector<26x128xf32>
      %c5_136 = arith.constant 5 : index
      %c4_137 = arith.constant 4 : index
      %262 = memref.load %arg1[%c5_136, %c4_137] : memref<12x9xf32, #tpu.memory_space<smem>>
      %263 = vector.broadcast %262 : f32 to vector<26x128xf32>
      %264 = arith.mulf %20, %263 : vector<26x128xf32>
      %265 = arith.addf %261, %264 : vector<26x128xf32>
      %c5_138 = arith.constant 5 : index
      %c5_139 = arith.constant 5 : index
      %266 = memref.load %arg1[%c5_138, %c5_139] : memref<12x9xf32, #tpu.memory_space<smem>>
      %267 = vector.broadcast %266 : f32 to vector<26x128xf32>
      %268 = arith.mulf %24, %267 : vector<26x128xf32>
      %269 = arith.addf %265, %268 : vector<26x128xf32>
      %c5_140 = arith.constant 5 : index
      %c6_141 = arith.constant 6 : index
      %270 = memref.load %arg1[%c5_140, %c6_141] : memref<12x9xf32, #tpu.memory_space<smem>>
      %271 = vector.broadcast %270 : f32 to vector<26x128xf32>
      %272 = arith.mulf %28, %271 : vector<26x128xf32>
      %273 = arith.addf %269, %272 : vector<26x128xf32>
      %c5_142 = arith.constant 5 : index
      %c7_143 = arith.constant 7 : index
      %274 = memref.load %arg1[%c5_142, %c7_143] : memref<12x9xf32, #tpu.memory_space<smem>>
      %275 = vector.broadcast %274 : f32 to vector<26x128xf32>
      %276 = arith.mulf %32, %275 : vector<26x128xf32>
      %277 = arith.addf %273, %276 : vector<26x128xf32>
      %c5_144 = arith.constant 5 : index
      %c8_145 = arith.constant 8 : index
      %278 = memref.load %arg1[%c5_144, %c8_145] : memref<12x9xf32, #tpu.memory_space<smem>>
      %279 = vector.broadcast %278 : f32 to vector<26x128xf32>
      %280 = arith.mulf %36, %279 : vector<26x128xf32>
      %281 = arith.addf %277, %280 : vector<26x128xf32>
      %c5_146 = arith.constant 5 : index
      %282 = memref.load %arg2[%c5_146] : memref<12xf32, #tpu.memory_space<smem>>
      %283 = vector.broadcast %282 : f32 to vector<26x128xf32>
      %284 = arith.addf %281, %283 : vector<26x128xf32>
      %c5_147 = arith.constant 5 : index
      %285 = arith.index_cast %arg5 : i32 to index
      %c0_148 = arith.constant 0 : index
      %c0_149 = arith.constant 0 : index
      %286 = vector.load %arg4[%c5_147, %285, %c0_148, %c0_149] : memref<12x26x26x128xf32, #tpu.memory_space<vmem>>, vector<1x1x26x128xf32>
      %287 = vector.shape_cast %286 : vector<1x1x26x128xf32> to vector<26x128xf32>
      %288 = vector.shape_cast %284 : vector<26x128xf32> to vector<1x1x26x128xf32>
      tpu.vector_store %arg4[%c5_147, %285, %c0_148, %c0_149], %288 {strides = array<i32>} : memref<12x26x26x128xf32, #tpu.memory_space<vmem>>, vector<1x1x26x128xf32>,
      %c6_150 = arith.constant 6 : index
      %c0_151 = arith.constant 0 : index
      %289 = memref.load %arg1[%c6_150, %c0_151] : memref<12x9xf32, #tpu.memory_space<smem>>
      %290 = vector.broadcast %289 : f32 to vector<26x128xf32>
      %291 = arith.mulf %4, %290 : vector<26x128xf32>
      %c6_152 = arith.constant 6 : index
      %c1_153 = arith.constant 1 : index
      %292 = memref.load %arg1[%c6_152, %c1_153] : memref<12x9xf32, #tpu.memory_space<smem>>
      %293 = vector.broadcast %292 : f32 to vector<26x128xf32>
      %294 = arith.mulf %8, %293 : vector<26x128xf32>
      %295 = arith.addf %291, %294 : vector<26x128xf32>
      %c6_154 = arith.constant 6 : index
      %c2_155 = arith.constant 2 : index
      %296 = memref.load %arg1[%c6_154, %c2_155] : memref<12x9xf32, #tpu.memory_space<smem>>
      %297 = vector.broadcast %296 : f32 to vector<26x128xf32>
      %298 = arith.mulf %12, %297 : vector<26x128xf32>
      %299 = arith.addf %295, %298 : vector<26x128xf32>
      %c6_156 = arith.constant 6 : index
      %c3_157 = arith.constant 3 : index
      %300 = memref.load %arg1[%c6_156, %c3_157] : memref<12x9xf32, #tpu.memory_space<smem>>
      %301 = vector.broadcast %300 : f32 to vector<26x128xf32>
      %302 = arith.mulf %16, %301 : vector<26x128xf32>
      %303 = arith.addf %299, %302 : vector<26x128xf32>
      %c6_158 = arith.constant 6 : index
      %c4_159 = arith.constant 4 : index
      %304 = memref.load %arg1[%c6_158, %c4_159] : memref<12x9xf32, #tpu.memory_space<smem>>
      %305 = vector.broadcast %304 : f32 to vector<26x128xf32>
      %306 = arith.mulf %20, %305 : vector<26x128xf32>
      %307 = arith.addf %303, %306 : vector<26x128xf32>
      %c6_160 = arith.constant 6 : index
      %c5_161 = arith.constant 5 : index
      %308 = memref.load %arg1[%c6_160, %c5_161] : memref<12x9xf32, #tpu.memory_space<smem>>
      %309 = vector.broadcast %308 : f32 to vector<26x128xf32>
      %310 = arith.mulf %24, %309 : vector<26x128xf32>
      %311 = arith.addf %307, %310 : vector<26x128xf32>
      %c6_162 = arith.constant 6 : index
      %c6_163 = arith.constant 6 : index
      %312 = memref.load %arg1[%c6_162, %c6_163] : memref<12x9xf32, #tpu.memory_space<smem>>
      %313 = vector.broadcast %312 : f32 to vector<26x128xf32>
      %314 = arith.mulf %28, %313 : vector<26x128xf32>
      %315 = arith.addf %311, %314 : vector<26x128xf32>
      %c6_164 = arith.constant 6 : index
      %c7_165 = arith.constant 7 : index
      %316 = memref.load %arg1[%c6_164, %c7_165] : memref<12x9xf32, #tpu.memory_space<smem>>
      %317 = vector.broadcast %316 : f32 to vector<26x128xf32>
      %318 = arith.mulf %32, %317 : vector<26x128xf32>
      %319 = arith.addf %315, %318 : vector<26x128xf32>
      %c6_166 = arith.constant 6 : index
      %c8_167 = arith.constant 8 : index
      %320 = memref.load %arg1[%c6_166, %c8_167] : memref<12x9xf32, #tpu.memory_space<smem>>
      %321 = vector.broadcast %320 : f32 to vector<26x128xf32>
      %322 = arith.mulf %36, %321 : vector<26x128xf32>
      %323 = arith.addf %319, %322 : vector<26x128xf32>
      %c6_168 = arith.constant 6 : index
      %324 = memref.load %arg2[%c6_168] : memref<12xf32, #tpu.memory_space<smem>>
      %325 = vector.broadcast %324 : f32 to vector<26x128xf32>
      %326 = arith.addf %323, %325 : vector<26x128xf32>
      %c6_169 = arith.constant 6 : index
      %327 = arith.index_cast %arg5 : i32 to index
      %c0_170 = arith.constant 0 : index
      %c0_171 = arith.constant 0 : index
      %328 = vector.load %arg4[%c6_169, %327, %c0_170, %c0_171] : memref<12x26x26x128xf32, #tpu.memory_space<vmem>>, vector<1x1x26x128xf32>
      %329 = vector.shape_cast %328 : vector<1x1x26x128xf32> to vector<26x128xf32>
      %330 = vector.shape_cast %326 : vector<26x128xf32> to vector<1x1x26x128xf32>
      tpu.vector_store %arg4[%c6_169, %327, %c0_170, %c0_171], %330 {strides = array<i32>} : memref<12x26x26x128xf32, #tpu.memory_space<vmem>>, vector<1x1x26x128xf32>,
      %c7_172 = arith.constant 7 : index
      %c0_173 = arith.constant 0 : index
      %331 = memref.load %arg1[%c7_172, %c0_173] : memref<12x9xf32, #tpu.memory_space<smem>>
      %332 = vector.broadcast %331 : f32 to vector<26x128xf32>
      %333 = arith.mulf %4, %332 : vector<26x128xf32>
      %c7_174 = arith.constant 7 : index
      %c1_175 = arith.constant 1 : index
      %334 = memref.load %arg1[%c7_174, %c1_175] : memref<12x9xf32, #tpu.memory_space<smem>>
      %335 = vector.broadcast %334 : f32 to vector<26x128xf32>
      %336 = arith.mulf %8, %335 : vector<26x128xf32>
      %337 = arith.addf %333, %336 : vector<26x128xf32>
      %c7_176 = arith.constant 7 : index
      %c2_177 = arith.constant 2 : index
      %338 = memref.load %arg1[%c7_176, %c2_177] : memref<12x9xf32, #tpu.memory_space<smem>>
      %339 = vector.broadcast %338 : f32 to vector<26x128xf32>
      %340 = arith.mulf %12, %339 : vector<26x128xf32>
      %341 = arith.addf %337, %340 : vector<26x128xf32>
      %c7_178 = arith.constant 7 : index
      %c3_179 = arith.constant 3 : index
      %342 = memref.load %arg1[%c7_178, %c3_179] : memref<12x9xf32, #tpu.memory_space<smem>>
      %343 = vector.broadcast %342 : f32 to vector<26x128xf32>
      %344 = arith.mulf %16, %343 : vector<26x128xf32>
      %345 = arith.addf %341, %344 : vector<26x128xf32>
      %c7_180 = arith.constant 7 : index
      %c4_181 = arith.constant 4 : index
      %346 = memref.load %arg1[%c7_180, %c4_181] : memref<12x9xf32, #tpu.memory_space<smem>>
      %347 = vector.broadcast %346 : f32 to vector<26x128xf32>
      %348 = arith.mulf %20, %347 : vector<26x128xf32>
      %349 = arith.addf %345, %348 : vector<26x128xf32>
      %c7_182 = arith.constant 7 : index
      %c5_183 = arith.constant 5 : index
      %350 = memref.load %arg1[%c7_182, %c5_183] : memref<12x9xf32, #tpu.memory_space<smem>>
      %351 = vector.broadcast %350 : f32 to vector<26x128xf32>
      %352 = arith.mulf %24, %351 : vector<26x128xf32>
      %353 = arith.addf %349, %352 : vector<26x128xf32>
      %c7_184 = arith.constant 7 : index
      %c6_185 = arith.constant 6 : index
      %354 = memref.load %arg1[%c7_184, %c6_185] : memref<12x9xf32, #tpu.memory_space<smem>>
      %355 = vector.broadcast %354 : f32 to vector<26x128xf32>
      %356 = arith.mulf %28, %355 : vector<26x128xf32>
      %357 = arith.addf %353, %356 : vector<26x128xf32>
      %c7_186 = arith.constant 7 : index
      %c7_187 = arith.constant 7 : index
      %358 = memref.load %arg1[%c7_186, %c7_187] : memref<12x9xf32, #tpu.memory_space<smem>>
      %359 = vector.broadcast %358 : f32 to vector<26x128xf32>
      %360 = arith.mulf %32, %359 : vector<26x128xf32>
      %361 = arith.addf %357, %360 : vector<26x128xf32>
      %c7_188 = arith.constant 7 : index
      %c8_189 = arith.constant 8 : index
      %362 = memref.load %arg1[%c7_188, %c8_189] : memref<12x9xf32, #tpu.memory_space<smem>>
      %363 = vector.broadcast %362 : f32 to vector<26x128xf32>
      %364 = arith.mulf %36, %363 : vector<26x128xf32>
      %365 = arith.addf %361, %364 : vector<26x128xf32>
      %c7_190 = arith.constant 7 : index
      %366 = memref.load %arg2[%c7_190] : memref<12xf32, #tpu.memory_space<smem>>
      %367 = vector.broadcast %366 : f32 to vector<26x128xf32>
      %368 = arith.addf %365, %367 : vector<26x128xf32>
      %c7_191 = arith.constant 7 : index
      %369 = arith.index_cast %arg5 : i32 to index
      %c0_192 = arith.constant 0 : index
      %c0_193 = arith.constant 0 : index
      %370 = vector.load %arg4[%c7_191, %369, %c0_192, %c0_193] : memref<12x26x26x128xf32, #tpu.memory_space<vmem>>, vector<1x1x26x128xf32>
      %371 = vector.shape_cast %370 : vector<1x1x26x128xf32> to vector<26x128xf32>
      %372 = vector.shape_cast %368 : vector<26x128xf32> to vector<1x1x26x128xf32>
      tpu.vector_store %arg4[%c7_191, %369, %c0_192, %c0_193], %372 {strides = array<i32>} : memref<12x26x26x128xf32, #tpu.memory_space<vmem>>, vector<1x1x26x128xf32>,
      %c8_194 = arith.constant 8 : index
      %c0_195 = arith.constant 0 : index
      %373 = memref.load %arg1[%c8_194, %c0_195] : memref<12x9xf32, #tpu.memory_space<smem>>
      %374 = vector.broadcast %373 : f32 to vector<26x128xf32>
      %375 = arith.mulf %4, %374 : vector<26x128xf32>
      %c8_196 = arith.constant 8 : index
      %c1_197 = arith.constant 1 : index
      %376 = memref.load %arg1[%c8_196, %c1_197] : memref<12x9xf32, #tpu.memory_space<smem>>
      %377 = vector.broadcast %376 : f32 to vector<26x128xf32>
      %378 = arith.mulf %8, %377 : vector<26x128xf32>
      %379 = arith.addf %375, %378 : vector<26x128xf32>
      %c8_198 = arith.constant 8 : index
      %c2_199 = arith.constant 2 : index
      %380 = memref.load %arg1[%c8_198, %c2_199] : memref<12x9xf32, #tpu.memory_space<smem>>
      %381 = vector.broadcast %380 : f32 to vector<26x128xf32>
      %382 = arith.mulf %12, %381 : vector<26x128xf32>
      %383 = arith.addf %379, %382 : vector<26x128xf32>
      %c8_200 = arith.constant 8 : index
      %c3_201 = arith.constant 3 : index
      %384 = memref.load %arg1[%c8_200, %c3_201] : memref<12x9xf32, #tpu.memory_space<smem>>
      %385 = vector.broadcast %384 : f32 to vector<26x128xf32>
      %386 = arith.mulf %16, %385 : vector<26x128xf32>
      %387 = arith.addf %383, %386 : vector<26x128xf32>
      %c8_202 = arith.constant 8 : index
      %c4_203 = arith.constant 4 : index
      %388 = memref.load %arg1[%c8_202, %c4_203] : memref<12x9xf32, #tpu.memory_space<smem>>
      %389 = vector.broadcast %388 : f32 to vector<26x128xf32>
      %390 = arith.mulf %20, %389 : vector<26x128xf32>
      %391 = arith.addf %387, %390 : vector<26x128xf32>
      %c8_204 = arith.constant 8 : index
      %c5_205 = arith.constant 5 : index
      %392 = memref.load %arg1[%c8_204, %c5_205] : memref<12x9xf32, #tpu.memory_space<smem>>
      %393 = vector.broadcast %392 : f32 to vector<26x128xf32>
      %394 = arith.mulf %24, %393 : vector<26x128xf32>
      %395 = arith.addf %391, %394 : vector<26x128xf32>
      %c8_206 = arith.constant 8 : index
      %c6_207 = arith.constant 6 : index
      %396 = memref.load %arg1[%c8_206, %c6_207] : memref<12x9xf32, #tpu.memory_space<smem>>
      %397 = vector.broadcast %396 : f32 to vector<26x128xf32>
      %398 = arith.mulf %28, %397 : vector<26x128xf32>
      %399 = arith.addf %395, %398 : vector<26x128xf32>
      %c8_208 = arith.constant 8 : index
      %c7_209 = arith.constant 7 : index
      %400 = memref.load %arg1[%c8_208, %c7_209] : memref<12x9xf32, #tpu.memory_space<smem>>
      %401 = vector.broadcast %400 : f32 to vector<26x128xf32>
      %402 = arith.mulf %32, %401 : vector<26x128xf32>
      %403 = arith.addf %399, %402 : vector<26x128xf32>
      %c8_210 = arith.constant 8 : index
      %c8_211 = arith.constant 8 : index
      %404 = memref.load %arg1[%c8_210, %c8_211] : memref<12x9xf32, #tpu.memory_space<smem>>
      %405 = vector.broadcast %404 : f32 to vector<26x128xf32>
      %406 = arith.mulf %36, %405 : vector<26x128xf32>
      %407 = arith.addf %403, %406 : vector<26x128xf32>
      %c8_212 = arith.constant 8 : index
      %408 = memref.load %arg2[%c8_212] : memref<12xf32, #tpu.memory_space<smem>>
      %409 = vector.broadcast %408 : f32 to vector<26x128xf32>
      %410 = arith.addf %407, %409 : vector<26x128xf32>
      %c8_213 = arith.constant 8 : index
      %411 = arith.index_cast %arg5 : i32 to index
      %c0_214 = arith.constant 0 : index
      %c0_215 = arith.constant 0 : index
      %412 = vector.load %arg4[%c8_213, %411, %c0_214, %c0_215] : memref<12x26x26x128xf32, #tpu.memory_space<vmem>>, vector<1x1x26x128xf32>
      %413 = vector.shape_cast %412 : vector<1x1x26x128xf32> to vector<26x128xf32>
      %414 = vector.shape_cast %410 : vector<26x128xf32> to vector<1x1x26x128xf32>
      tpu.vector_store %arg4[%c8_213, %411, %c0_214, %c0_215], %414 {strides = array<i32>} : memref<12x26x26x128xf32, #tpu.memory_space<vmem>>, vector<1x1x26x128xf32>,
      %c9 = arith.constant 9 : index
      %c0_216 = arith.constant 0 : index
      %415 = memref.load %arg1[%c9, %c0_216] : memref<12x9xf32, #tpu.memory_space<smem>>
      %416 = vector.broadcast %415 : f32 to vector<26x128xf32>
      %417 = arith.mulf %4, %416 : vector<26x128xf32>
      %c9_217 = arith.constant 9 : index
      %c1_218 = arith.constant 1 : index
      %418 = memref.load %arg1[%c9_217, %c1_218] : memref<12x9xf32, #tpu.memory_space<smem>>
      %419 = vector.broadcast %418 : f32 to vector<26x128xf32>
      %420 = arith.mulf %8, %419 : vector<26x128xf32>
      %421 = arith.addf %417, %420 : vector<26x128xf32>
      %c9_219 = arith.constant 9 : index
      %c2_220 = arith.constant 2 : index
      %422 = memref.load %arg1[%c9_219, %c2_220] : memref<12x9xf32, #tpu.memory_space<smem>>
      %423 = vector.broadcast %422 : f32 to vector<26x128xf32>
      %424 = arith.mulf %12, %423 : vector<26x128xf32>
      %425 = arith.addf %421, %424 : vector<26x128xf32>
      %c9_221 = arith.constant 9 : index
      %c3_222 = arith.constant 3 : index
      %426 = memref.load %arg1[%c9_221, %c3_222] : memref<12x9xf32, #tpu.memory_space<smem>>
      %427 = vector.broadcast %426 : f32 to vector<26x128xf32>
      %428 = arith.mulf %16, %427 : vector<26x128xf32>
      %429 = arith.addf %425, %428 : vector<26x128xf32>
      %c9_223 = arith.constant 9 : index
      %c4_224 = arith.constant 4 : index
      %430 = memref.load %arg1[%c9_223, %c4_224] : memref<12x9xf32, #tpu.memory_space<smem>>
      %431 = vector.broadcast %430 : f32 to vector<26x128xf32>
      %432 = arith.mulf %20, %431 : vector<26x128xf32>
      %433 = arith.addf %429, %432 : vector<26x128xf32>
      %c9_225 = arith.constant 9 : index
      %c5_226 = arith.constant 5 : index
      %434 = memref.load %arg1[%c9_225, %c5_226] : memref<12x9xf32, #tpu.memory_space<smem>>
      %435 = vector.broadcast %434 : f32 to vector<26x128xf32>
      %436 = arith.mulf %24, %435 : vector<26x128xf32>
      %437 = arith.addf %433, %436 : vector<26x128xf32>
      %c9_227 = arith.constant 9 : index
      %c6_228 = arith.constant 6 : index
      %438 = memref.load %arg1[%c9_227, %c6_228] : memref<12x9xf32, #tpu.memory_space<smem>>
      %439 = vector.broadcast %438 : f32 to vector<26x128xf32>
      %440 = arith.mulf %28, %439 : vector<26x128xf32>
      %441 = arith.addf %437, %440 : vector<26x128xf32>
      %c9_229 = arith.constant 9 : index
      %c7_230 = arith.constant 7 : index
      %442 = memref.load %arg1[%c9_229, %c7_230] : memref<12x9xf32, #tpu.memory_space<smem>>
      %443 = vector.broadcast %442 : f32 to vector<26x128xf32>
      %444 = arith.mulf %32, %443 : vector<26x128xf32>
      %445 = arith.addf %441, %444 : vector<26x128xf32>
      %c9_231 = arith.constant 9 : index
      %c8_232 = arith.constant 8 : index
      %446 = memref.load %arg1[%c9_231, %c8_232] : memref<12x9xf32, #tpu.memory_space<smem>>
      %447 = vector.broadcast %446 : f32 to vector<26x128xf32>
      %448 = arith.mulf %36, %447 : vector<26x128xf32>
      %449 = arith.addf %445, %448 : vector<26x128xf32>
      %c9_233 = arith.constant 9 : index
      %450 = memref.load %arg2[%c9_233] : memref<12xf32, #tpu.memory_space<smem>>
      %451 = vector.broadcast %450 : f32 to vector<26x128xf32>
      %452 = arith.addf %449, %451 : vector<26x128xf32>
      %c9_234 = arith.constant 9 : index
      %453 = arith.index_cast %arg5 : i32 to index
      %c0_235 = arith.constant 0 : index
      %c0_236 = arith.constant 0 : index
      %454 = vector.load %arg4[%c9_234, %453, %c0_235, %c0_236] : memref<12x26x26x128xf32, #tpu.memory_space<vmem>>, vector<1x1x26x128xf32>
      %455 = vector.shape_cast %454 : vector<1x1x26x128xf32> to vector<26x128xf32>
      %456 = vector.shape_cast %452 : vector<26x128xf32> to vector<1x1x26x128xf32>
      tpu.vector_store %arg4[%c9_234, %453, %c0_235, %c0_236], %456 {strides = array<i32>} : memref<12x26x26x128xf32, #tpu.memory_space<vmem>>, vector<1x1x26x128xf32>,
      %c10 = arith.constant 10 : index
      %c0_237 = arith.constant 0 : index
      %457 = memref.load %arg1[%c10, %c0_237] : memref<12x9xf32, #tpu.memory_space<smem>>
      %458 = vector.broadcast %457 : f32 to vector<26x128xf32>
      %459 = arith.mulf %4, %458 : vector<26x128xf32>
      %c10_238 = arith.constant 10 : index
      %c1_239 = arith.constant 1 : index
      %460 = memref.load %arg1[%c10_238, %c1_239] : memref<12x9xf32, #tpu.memory_space<smem>>
      %461 = vector.broadcast %460 : f32 to vector<26x128xf32>
      %462 = arith.mulf %8, %461 : vector<26x128xf32>
      %463 = arith.addf %459, %462 : vector<26x128xf32>
      %c10_240 = arith.constant 10 : index
      %c2_241 = arith.constant 2 : index
      %464 = memref.load %arg1[%c10_240, %c2_241] : memref<12x9xf32, #tpu.memory_space<smem>>
      %465 = vector.broadcast %464 : f32 to vector<26x128xf32>
      %466 = arith.mulf %12, %465 : vector<26x128xf32>
      %467 = arith.addf %463, %466 : vector<26x128xf32>
      %c10_242 = arith.constant 10 : index
      %c3_243 = arith.constant 3 : index
      %468 = memref.load %arg1[%c10_242, %c3_243] : memref<12x9xf32, #tpu.memory_space<smem>>
      %469 = vector.broadcast %468 : f32 to vector<26x128xf32>
      %470 = arith.mulf %16, %469 : vector<26x128xf32>
      %471 = arith.addf %467, %470 : vector<26x128xf32>
      %c10_244 = arith.constant 10 : index
      %c4_245 = arith.constant 4 : index
      %472 = memref.load %arg1[%c10_244, %c4_245] : memref<12x9xf32, #tpu.memory_space<smem>>
      %473 = vector.broadcast %472 : f32 to vector<26x128xf32>
      %474 = arith.mulf %20, %473 : vector<26x128xf32>
      %475 = arith.addf %471, %474 : vector<26x128xf32>
      %c10_246 = arith.constant 10 : index
      %c5_247 = arith.constant 5 : index
      %476 = memref.load %arg1[%c10_246, %c5_247] : memref<12x9xf32, #tpu.memory_space<smem>>
      %477 = vector.broadcast %476 : f32 to vector<26x128xf32>
      %478 = arith.mulf %24, %477 : vector<26x128xf32>
      %479 = arith.addf %475, %478 : vector<26x128xf32>
      %c10_248 = arith.constant 10 : index
      %c6_249 = arith.constant 6 : index
      %480 = memref.load %arg1[%c10_248, %c6_249] : memref<12x9xf32, #tpu.memory_space<smem>>
      %481 = vector.broadcast %480 : f32 to vector<26x128xf32>
      %482 = arith.mulf %28, %481 : vector<26x128xf32>
      %483 = arith.addf %479, %482 : vector<26x128xf32>
      %c10_250 = arith.constant 10 : index
      %c7_251 = arith.constant 7 : index
      %484 = memref.load %arg1[%c10_250, %c7_251] : memref<12x9xf32, #tpu.memory_space<smem>>
      %485 = vector.broadcast %484 : f32 to vector<26x128xf32>
      %486 = arith.mulf %32, %485 : vector<26x128xf32>
      %487 = arith.addf %483, %486 : vector<26x128xf32>
      %c10_252 = arith.constant 10 : index
      %c8_253 = arith.constant 8 : index
      %488 = memref.load %arg1[%c10_252, %c8_253] : memref<12x9xf32, #tpu.memory_space<smem>>
      %489 = vector.broadcast %488 : f32 to vector<26x128xf32>
      %490 = arith.mulf %36, %489 : vector<26x128xf32>
      %491 = arith.addf %487, %490 : vector<26x128xf32>
      %c10_254 = arith.constant 10 : index
      %492 = memref.load %arg2[%c10_254] : memref<12xf32, #tpu.memory_space<smem>>
      %493 = vector.broadcast %492 : f32 to vector<26x128xf32>
      %494 = arith.addf %491, %493 : vector<26x128xf32>
      %c10_255 = arith.constant 10 : index
      %495 = arith.index_cast %arg5 : i32 to index
      %c0_256 = arith.constant 0 : index
      %c0_257 = arith.constant 0 : index
      %496 = vector.load %arg4[%c10_255, %495, %c0_256, %c0_257] : memref<12x26x26x128xf32, #tpu.memory_space<vmem>>, vector<1x1x26x128xf32>
      %497 = vector.shape_cast %496 : vector<1x1x26x128xf32> to vector<26x128xf32>
      %498 = vector.shape_cast %494 : vector<26x128xf32> to vector<1x1x26x128xf32>
      tpu.vector_store %arg4[%c10_255, %495, %c0_256, %c0_257], %498 {strides = array<i32>} : memref<12x26x26x128xf32, #tpu.memory_space<vmem>>, vector<1x1x26x128xf32>,
      %c11 = arith.constant 11 : index
      %c0_258 = arith.constant 0 : index
      %499 = memref.load %arg1[%c11, %c0_258] : memref<12x9xf32, #tpu.memory_space<smem>>
      %500 = vector.broadcast %499 : f32 to vector<26x128xf32>
      %501 = arith.mulf %4, %500 : vector<26x128xf32>
      %c11_259 = arith.constant 11 : index
      %c1_260 = arith.constant 1 : index
      %502 = memref.load %arg1[%c11_259, %c1_260] : memref<12x9xf32, #tpu.memory_space<smem>>
      %503 = vector.broadcast %502 : f32 to vector<26x128xf32>
      %504 = arith.mulf %8, %503 : vector<26x128xf32>
      %505 = arith.addf %501, %504 : vector<26x128xf32>
      %c11_261 = arith.constant 11 : index
      %c2_262 = arith.constant 2 : index
      %506 = memref.load %arg1[%c11_261, %c2_262] : memref<12x9xf32, #tpu.memory_space<smem>>
      %507 = vector.broadcast %506 : f32 to vector<26x128xf32>
      %508 = arith.mulf %12, %507 : vector<26x128xf32>
      %509 = arith.addf %505, %508 : vector<26x128xf32>
      %c11_263 = arith.constant 11 : index
      %c3_264 = arith.constant 3 : index
      %510 = memref.load %arg1[%c11_263, %c3_264] : memref<12x9xf32, #tpu.memory_space<smem>>
      %511 = vector.broadcast %510 : f32 to vector<26x128xf32>
      %512 = arith.mulf %16, %511 : vector<26x128xf32>
      %513 = arith.addf %509, %512 : vector<26x128xf32>
      %c11_265 = arith.constant 11 : index
      %c4_266 = arith.constant 4 : index
      %514 = memref.load %arg1[%c11_265, %c4_266] : memref<12x9xf32, #tpu.memory_space<smem>>
      %515 = vector.broadcast %514 : f32 to vector<26x128xf32>
      %516 = arith.mulf %20, %515 : vector<26x128xf32>
      %517 = arith.addf %513, %516 : vector<26x128xf32>
      %c11_267 = arith.constant 11 : index
      %c5_268 = arith.constant 5 : index
      %518 = memref.load %arg1[%c11_267, %c5_268] : memref<12x9xf32, #tpu.memory_space<smem>>
      %519 = vector.broadcast %518 : f32 to vector<26x128xf32>
      %520 = arith.mulf %24, %519 : vector<26x128xf32>
      %521 = arith.addf %517, %520 : vector<26x128xf32>
      %c11_269 = arith.constant 11 : index
      %c6_270 = arith.constant 6 : index
      %522 = memref.load %arg1[%c11_269, %c6_270] : memref<12x9xf32, #tpu.memory_space<smem>>
      %523 = vector.broadcast %522 : f32 to vector<26x128xf32>
      %524 = arith.mulf %28, %523 : vector<26x128xf32>
      %525 = arith.addf %521, %524 : vector<26x128xf32>
      %c11_271 = arith.constant 11 : index
      %c7_272 = arith.constant 7 : index
      %526 = memref.load %arg1[%c11_271, %c7_272] : memref<12x9xf32, #tpu.memory_space<smem>>
      %527 = vector.broadcast %526 : f32 to vector<26x128xf32>
      %528 = arith.mulf %32, %527 : vector<26x128xf32>
      %529 = arith.addf %525, %528 : vector<26x128xf32>
      %c11_273 = arith.constant 11 : index
      %c8_274 = arith.constant 8 : index
      %530 = memref.load %arg1[%c11_273, %c8_274] : memref<12x9xf32, #tpu.memory_space<smem>>
      %531 = vector.broadcast %530 : f32 to vector<26x128xf32>
      %532 = arith.mulf %36, %531 : vector<26x128xf32>
      %533 = arith.addf %529, %532 : vector<26x128xf32>
      %c11_275 = arith.constant 11 : index
      %534 = memref.load %arg2[%c11_275] : memref<12xf32, #tpu.memory_space<smem>>
      %535 = vector.broadcast %534 : f32 to vector<26x128xf32>
      %536 = arith.addf %533, %535 : vector<26x128xf32>
      %c11_276 = arith.constant 11 : index
      %537 = arith.index_cast %arg5 : i32 to index
      %c0_277 = arith.constant 0 : index
      %c0_278 = arith.constant 0 : index
      %538 = vector.load %arg4[%c11_276, %537, %c0_277, %c0_278] : memref<12x26x26x128xf32, #tpu.memory_space<vmem>>, vector<1x1x26x128xf32>
      %539 = vector.shape_cast %538 : vector<1x1x26x128xf32> to vector<26x128xf32>
      %540 = vector.shape_cast %536 : vector<26x128xf32> to vector<1x1x26x128xf32>
      tpu.vector_store %arg4[%c11_276, %537, %c0_277, %c0_278], %540 {strides = array<i32>} : memref<12x26x26x128xf32, #tpu.memory_space<vmem>>, vector<1x1x26x128xf32>,
    }
    %c26_i32_0 = arith.constant 26 : i32
    return
  }
  func.func @transform_0(%arg0: i32) -> (i32, i32) {
    %c0_i32 = arith.constant 0 : i32
    %c0_i32_0 = arith.constant 0 : i32
    %c0_i32_1 = arith.constant 0 : i32
    return %c0_i32, %c0_i32_0 : i32, i32
  }
  func.func @transform_1(%arg0: i32) -> i32 {
    %c0_i32 = arith.constant 0 : i32
    %c0_i32_0 = arith.constant 0 : i32
    return %c0_i32 : i32
  }
  func.func @transform_2(%arg0: i32) -> (i32, i32, i32) {
    %c0_i32 = arith.constant 0 : i32
    %c0_i32_0 = arith.constant 0 : i32
    %c0_i32_1 = arith.constant 0 : i32
    return %c0_i32, %c0_i32_0, %arg0 : i32, i32, i32
  }
  func.func @transform_3(%arg0: i32) -> (i32, i32, i32, i32) {
    %c0_i32 = arith.constant 0 : i32
    %c0_i32_0 = arith.constant 0 : i32
    %c0_i32_1 = arith.constant 0 : i32
    %c0_i32_2 = arith.constant 0 : i32
    return %c0_i32, %c0_i32_0, %c0_i32_1, %arg0 : i32, i32, i32, i32
  }
}

</mosaic_0001>

<llo_original>
// kernel: tpu_custom_call.1
$region0: #{tpu_custom_call.1}
  #allocation0 [shape = 'u32[]', space=smem, size = 0x4, offset = 0x4, fixed_abs, tag = 'smem constant byte address 0x4 - core index']
  #allocation1 [shape = 'u32[144,128]{1,0:T(1,128)}', space=vmem, size = 0x12000, scoped, tag = 'internal scratch']
  %s0 = inlined_call_operand.hbm [shape: f32[12,9], index: 0, kind: input, shape index: {}]
  %s1 = inlined_call_operand.hbm [shape: f32[12], index: 1, kind: input, shape index: {}]
  %s2 = inlined_call_operand.hbm [shape: f32[28,28,128], index: 2, kind: input, shape index: {}]
  %s3 = inlined_call_operand.hbm [shape: f32[12,26,26,128], index: 3, kind: output, shape index: {}]
  %s4 = sld [smem:[#allocation0]]
  $region41: #{tpu_custom_call.1} parent=0
    _
  %s6 = ssub.s32 1, %s4
  %s7 = scalar_select 0, %s6, %s4
  $region1: #{tpu_custom_call.1} parent=0
    #allocation2 [shape = 'u8[8192]{0}', space=smem, size = 0x2000, scoped, tag = 'input window, operand 0, single buffered']
    #allocation3 [shape = 's32[1]{0}', space=sflag, size = 0x4, scoped, tag = 'scoped memory for tpu_custom_call.1']
    #allocation4 [shape = 's32[1]{0}', space=sflag, size = 0x4, scoped, tag = 'scoped memory for tpu_custom_call.1']
    #allocation5 [shape = 's32[1]{0}', space=sflag, size = 0x4, scoped, tag = 'scoped memory for tpu_custom_call.1']
    #allocation6 [shape = 'u8[512]{0}', space=smem, size = 0x200, scoped, tag = 'input window, operand 1, single buffered']
    #allocation7 [shape = 's32[1]{0}', space=sflag, size = 0x4, scoped, tag = 'scoped memory for tpu_custom_call.1']
    #allocation8 [shape = 'u8[458752]{0}', space=vmem, size = 0x70000, scoped, tag = 'input window, operand 2, single buffered']
    #allocation9 [shape = 'u8[5111808]{0}', space=vmem, size = 0x4e0000, scoped, tag = 'output window, operand 0, single buffered']
    %8 = vsyncpa [#allocation5], 0
    %9 = vsyncpa [#allocation7], 0
    %10 = vsyncpa [#allocation3], 0
    %11 = vsyncpa [#allocation4], 0
    // Predicated region
    $region2: #{tpu_custom_call.1} parent=1 // pred_check
      _
    $region3: #{tpu_custom_call.1} parent=1 // pred_check_branch
      %13 = sbr.rel (0) target = $region5
    $region4: #{tpu_custom_call.1} parent=1 // pred_region
      %s15 = ssub.s32 256, 256
      %16 = vsyncadd [#allocation5], %s15
      %21 = dma.hbm_to_smem %s0, 256, [#allocation2], [#allocation5], 128, 128, 8
    $region5: #{tpu_custom_call.1} parent=1 // pred_fallthru
      _
    // Predicated region
    $region6: #{tpu_custom_call.1} parent=1 // pred_check
      _
    $region7: #{tpu_custom_call.1} parent=1 // pred_check_branch
      %23 = sbr.rel (0) target = $region9
    $region8: #{tpu_custom_call.1} parent=1 // pred_region
      %s25 = ssub.s32 16, 16
      %26 = vsyncadd [#allocation7], %s25
      %29 = dma.hbm_to_smem %s1, 16, [#allocation6], [#allocation7]
    $region9: #{tpu_custom_call.1} parent=1 // pred_fallthru
      _
    // Predicated region
    $region10: #{tpu_custom_call.1} parent=1 // pred_check
      _
    $region11: #{tpu_custom_call.1} parent=1 // pred_check_branch
      %31 = sbr.rel (0) target = $region13
    $region12: #{tpu_custom_call.1} parent=1 // pred_region
      %s33 = ssub.s32 14336, 14336
      %34 = vsyncadd [#allocation3], %s33
      %s35 = sshll.u32 [#allocation8], 4
      %s36 = int_to_ptr.vmem [resolvable:$true] %s35
      %41 = dma.hbm_to_vmem [thread:$0]  %s2, 14336, %s36, [#allocation3], 128, 128, 8
    $region13: #{tpu_custom_call.1} parent=1 // pred_fallthru
      _
    // Predicated region
    $region14: #{tpu_custom_call.1} parent=1 // pred_check
      _
    $region15: #{tpu_custom_call.1} parent=1 // pred_check_branch
      %43 = sbr.rel (0) target = $region17
    $region16: #{tpu_custom_call.1} parent=1 // pred_region
      %44 = dma.done [#allocation5], 256
    $region17: #{tpu_custom_call.1} parent=1 // pred_fallthru
      _
    // Predicated region
    $region18: #{tpu_custom_call.1} parent=1 // pred_check
      _
    $region19: #{tpu_custom_call.1} parent=1 // pred_check_branch
      %46 = sbr.rel (0) target = $region21
    $region20: #{tpu_custom_call.1} parent=1 // pred_region
      %47 = dma.done [#allocation7], 16
    $region21: #{tpu_custom_call.1} parent=1 // pred_fallthru
      _
    // Predicated region
    $region22: #{tpu_custom_call.1} parent=1 // pred_check
      _
    $region23: #{tpu_custom_call.1} parent=1 // pred_check_branch
      %49 = sbr.rel (0) target = $region25
    $region24: #{tpu_custom_call.1} parent=1 // pred_region
      %50 = dma.done [#allocation3], 14336
    $region25: #{tpu_custom_call.1} parent=1 // pred_fallthru
      _
    %51 = sfence
    loop: start=0, step=1, limit=26
    $region26: #{tpu_custom_call.1} parent=1 // loop_pre_header
      _
    $region27: #{tpu_custom_call.1} parent=1 // loop_header
      %s53 = sphi 0, %s57
      %p54 = scmp.ge.s32.totalorder %s53, 26
    $region28: #{tpu_custom_call.1} parent=1 // loop_header_branch
      %56 = sbr.rel (%p54) target = $region32
    $region29: #{tpu_custom_call.1} parent=1 // loop_body
      %s58 = smul.u32 %s53, 32
      %s59 = scalar_lea.vmem [#allocation8], %s58
      %v60 = vld [vmem:[%s59] sm:$0xff]
      %v61 = vld [vmem:[%s59 + $0x8] sm:$0xff]
      %v62 = vld [vmem:[%s59 + $0x10] sm:$0xff]
      %v63 = vld [vmem:[%s59 + $0x18] sm:$0x3]
      %v64 = vld [vmem:[%s59 + $0x1] sm:$0xff]
      %v65 = vld [vmem:[%s59 + $0x9] sm:$0xff]
      %v66 = vld [vmem:[%s59 + $0x11] sm:$0xff]
      %v67 = vld [vmem:[%s59 + $0x19] sm:$0x3]
      %v68 = vld [vmem:[%s59 + $0x2] sm:$0xff]
      %v69 = vld [vmem:[%s59 + $0xa] sm:$0xff]
      %v70 = vld [vmem:[%s59 + $0x12] sm:$0xff]
      %v71 = vld [vmem:[%s59 + $0x1a] sm:$0x3]
      %s72 = sadd.s32 %s53, 1
      %s73 = smul.u32 %s72, 32
      %s74 = scalar_lea.vmem [#allocation8], %s73
      %v75 = vld [vmem:[%s74] sm:$0xff]
      %v76 = vld [vmem:[%s74 + $0x8] sm:$0xff]
      %v77 = vld [vmem:[%s74 + $0x10] sm:$0xff]
      %v78 = vld [vmem:[%s74 + $0x18] sm:$0x3]
      %v79 = vld [vmem:[%s74 + $0x1] sm:$0xff]
      %v80 = vld [vmem:[%s74 + $0x9] sm:$0xff]
      %v81 = vld [vmem:[%s74 + $0x11] sm:$0xff]
      %v82 = vld [vmem:[%s74 + $0x19] sm:$0x3]
      %v83 = vld [vmem:[%s74 + $0x2] sm:$0xff]
      %v84 = vld [vmem:[%s74 + $0xa] sm:$0xff]
      %v85 = vld [vmem:[%s74 + $0x12] sm:$0xff]
      %v86 = vld [vmem:[%s74 + $0x1a] sm:$0x3]
      %s87 = sadd.s32 %s53, 2
      %s88 = smul.u32 %s87, 32
      %s89 = scalar_lea.vmem [#allocation8], %s88
      %v90 = vld [vmem:[%s89] sm:$0xff]
      %v91 = vld [vmem:[%s89 + $0x8] sm:$0xff]
      %v92 = vld [vmem:[%s89 + $0x10] sm:$0xff]
      %v93 = vld [vmem:[%s89 + $0x18] sm:$0x3]
      %v94 = vld [vmem:[%s89 + $0x1] sm:$0xff]
      %v95 = vld [vmem:[%s89 + $0x9] sm:$0xff]
      %v96 = vld [vmem:[%s89 + $0x11] sm:$0xff]
      %v97 = vld [vmem:[%s89 + $0x19] sm:$0x3]
      %v98 = vld [vmem:[%s89 + $0x2] sm:$0xff]
      %v99 = vld [vmem:[%s89 + $0xa] sm:$0xff]
      %v100 = vld [vmem:[%s89 + $0x12] sm:$0xff]
      %v101 = vld [vmem:[%s89 + $0x1a] sm:$0x3]
      %s102 = sld [smem:[#allocation2]]
      %v103 = vstv %s102
      %v104 = vmul.f32 %v60, %v103
      %v105 = vmul.f32 %v61, %v103
      %v106 = vmul.f32 %v62, %v103
      %v107 = vmul.f32 %v63, %v103
      %s108 = sld [smem:[#allocation2 + $0x1]]
      %v109 = vstv %s108
      %v110 = vmul.f32 %v64, %v109
      %v111 = vmul.f32 %v65, %v109
      %v112 = vmul.f32 %v66, %v109
      %v113 = vmul.f32 %v67, %v109
      %v114 = vadd.f32 %v104, %v110
      %v115 = vadd.f32 %v105, %v111
      %v116 = vadd.f32 %v106, %v112
      %v117 = vadd.f32 %v107, %v113
      %s118 = sld [smem:[#allocation2 + $0x2]]
      %v119 = vstv %s118
      %v120 = vmul.f32 %v68, %v119
      %v121 = vmul.f32 %v69, %v119
      %v122 = vmul.f32 %v70, %v119
      %v123 = vmul.f32 %v71, %v119
      %v124 = vadd.f32 %v114, %v120
      %v125 = vadd.f32 %v115, %v121
      %v126 = vadd.f32 %v116, %v122
      %v127 = vadd.f32 %v117, %v123
      %s128 = sld [smem:[#allocation2 + $0x3]]
      %v129 = vstv %s128
      %v130 = vmul.f32 %v75, %v129
      %v131 = vmul.f32 %v76, %v129
      %v132 = vmul.f32 %v77, %v129
      %v133 = vmul.f32 %v78, %v129
      %v134 = vadd.f32 %v124, %v130
      %v135 = vadd.f32 %v125, %v131
      %v136 = vadd.f32 %v126, %v132
      %v137 = vadd.f32 %v127, %v133
      %s138 = sld [smem:[#allocation2 + $0x4]]
      %v139 = vstv %s138
      %v140 = vmul.f32 %v79, %v139
      %v141 = vmul.f32 %v80, %v139
      %v142 = vmul.f32 %v81, %v139
      %v143 = vmul.f32 %v82, %v139
      %v144 = vadd.f32 %v134, %v140
      %v145 = vadd.f32 %v135, %v141
      %v146 = vadd.f32 %v136, %v142
      %v147 = vadd.f32 %v137, %v143
      %s148 = sld [smem:[#allocation2 + $0x5]]
      %v149 = vstv %s148
      %v150 = vmul.f32 %v83, %v149
      %v151 = vmul.f32 %v84, %v149
      %v152 = vmul.f32 %v85, %v149
      %v153 = vmul.f32 %v86, %v149
      %v154 = vadd.f32 %v144, %v150
      %v155 = vadd.f32 %v145, %v151
      %v156 = vadd.f32 %v146, %v152
      %v157 = vadd.f32 %v147, %v153
      %s158 = sld [smem:[#allocation2 + $0x6]]
      %v159 = vstv %s158
      %v160 = vmul.f32 %v90, %v159
      %v161 = vmul.f32 %v91, %v159
      %v162 = vmul.f32 %v92, %v159
      %v163 = vmul.f32 %v93, %v159
      %v164 = vadd.f32 %v154, %v160
      %v165 = vadd.f32 %v155, %v161
      %v166 = vadd.f32 %v156, %v162
      %v167 = vadd.f32 %v157, %v163
      %s168 = sld [smem:[#allocation2 + $0x7]]
      %v169 = vstv %s168
      %v170 = vmul.f32 %v94, %v169
      %v171 = vmul.f32 %v95, %v169
      %v172 = vmul.f32 %v96, %v169
      %v173 = vmul.f32 %v97, %v169
      %v174 = vadd.f32 %v164, %v170
      %v175 = vadd.f32 %v165, %v171
      %v176 = vadd.f32 %v166, %v172
      %v177 = vadd.f32 %v167, %v173
      %s178 = sld [smem:[#allocation2 + $0x8]]
      %v179 = vstv %s178
      %v180 = vmul.f32 %v98, %v179
      %v181 = vmul.f32 %v99, %v179
      %v182 = vmul.f32 %v100, %v179
      %v183 = vmul.f32 %v101, %v179
      %v184 = vadd.f32 %v174, %v180
      %v185 = vadd.f32 %v175, %v181
      %v186 = vadd.f32 %v176, %v182
      %v187 = vadd.f32 %v177, %v183
      %s188 = sld [smem:[#allocation6]]
      %v189 = vstv %s188
      %v190 = vadd.f32 %v184, %v189
      %v191 = vadd.f32 %v185, %v189
      %v192 = vadd.f32 %v186, %v189
      %v193 = vadd.f32 %v187, %v189
      %s194 = scalar_lea.vmem [#allocation9], %s58
      %195 = vst [vmem:[%s194] sm:$0xff] %v190
      %196 = vst [vmem:[%s194 + $0x8] sm:$0xff] %v191
      %197 = vst [vmem:[%s194 + $0x10] sm:$0xff] %v192
      %198 = vst [vmem:[%s194 + $0x18] sm:$0x3] %v193
      %s199 = sld [smem:[#allocation2 + $0x80]]
      %v200 = vstv %s199
      %v201 = vmul.f32 %v60, %v200
      %v202 = vmul.f32 %v61, %v200
      %v203 = vmul.f32 %v62, %v200
      %v204 = vmul.f32 %v63, %v200
      %s205 = sld [smem:[#allocation2 + $0x81]]
      %v206 = vstv %s205
      %v207 = vmul.f32 %v64, %v206
      %v208 = vmul.f32 %v65, %v206
      %v209 = vmul.f32 %v66, %v206
      %v210 = vmul.f32 %v67, %v206
      %v211 = vadd.f32 %v201, %v207
      %v212 = vadd.f32 %v202, %v208
      %v213 = vadd.f32 %v203, %v209
      %v214 = vadd.f32 %v204, %v210
      %s215 = sld [smem:[#allocation2 + $0x82]]
      %v216 = vstv %s215
      %v217 = vmul.f32 %v68, %v216
      %v218 = vmul.f32 %v69, %v216
      %v219 = vmul.f32 %v70, %v216
      %v220 = vmul.f32 %v71, %v216
      %v221 = vadd.f32 %v211, %v217
      %v222 = vadd.f32 %v212, %v218
      %v223 = vadd.f32 %v213, %v219
      %v224 = vadd.f32 %v214, %v220
      %s225 = sld [smem:[#allocation2 + $0x83]]
      %v226 = vstv %s225
      %v227 = vmul.f32 %v75, %v226
      %v228 = vmul.f32 %v76, %v226
      %v229 = vmul.f32 %v77, %v226
      %v230 = vmul.f32 %v78, %v226
      %v231 = vadd.f32 %v221, %v227
      %v232 = vadd.f32 %v222, %v228
      %v233 = vadd.f32 %v223, %v229
      %v234 = vadd.f32 %v224, %v230
      %s235 = sld [smem:[#allocation2 + $0x84]]
      %v236 = vstv %s235
      %v237 = vmul.f32 %v79, %v236
      %v238 = vmul.f32 %v80, %v236
      %v239 = vmul.f32 %v81, %v236
      %v240 = vmul.f32 %v82, %v236
      %v241 = vadd.f32 %v231, %v237
      %v242 = vadd.f32 %v232, %v238
      %v243 = vadd.f32 %v233, %v239
      %v244 = vadd.f32 %v234, %v240
      %s245 = sld [smem:[#allocation2 + $0x85]]
      %v246 = vstv %s245
      %v247 = vmul.f32 %v83, %v246
      %v248 = vmul.f32 %v84, %v246
      %v249 = vmul.f32 %v85, %v246
      %v250 = vmul.f32 %v86, %v246
      %v251 = vadd.f32 %v241, %v247
      %v252 = vadd.f32 %v242, %v248
      %v253 = vadd.f32 %v243, %v249
      %v254 = vadd.f32 %v244, %v250
      %s255 = sld [smem:[#allocation2 + $0x86]]
      %v256 = vstv %s255
      %v257 = vmul.f32 %v90, %v256
      %v258 = vmul.f32 %v91, %v256
      %v259 = vmul.f32 %v92, %v256
      %v260 = vmul.f32 %v93, %v256
      %v261 = vadd.f32 %v251, %v257
      %v262 = vadd.f32 %v252, %v258
      %v263 = vadd.f32 %v253, %v259
      %v264 = vadd.f32 %v254, %v260
      %s265 = sld [smem:[#allocation2 + $0x87]]
      %v266 = vstv %s265
      %v267 = vmul.f32 %v94, %v266
      %v268 = vmul.f32 %v95, %v266
      %v269 = vmul.f32 %v96, %v266
      %v270 = vmul.f32 %v97, %v266
      %v271 = vadd.f32 %v261, %v267
      %v272 = vadd.f32 %v262, %v268
      %v273 = vadd.f32 %v263, %v269
      %v274 = vadd.f32 %v264, %v270
      %s275 = sld [smem:[#allocation2 + $0x88]]
      %v276 = vstv %s275
      %v277 = vmul.f32 %v98, %v276
      %v278 = vmul.f32 %v99, %v276
      %v279 = vmul.f32 %v100, %v276
      %v280 = vmul.f32 %v101, %v276
      %v281 = vadd.f32 %v271, %v277
      %v282 = vadd.f32 %v272, %v278
      %v283 = vadd.f32 %v273, %v279
      %v284 = vadd.f32 %v274, %v280
      %s285 = sld [smem:[#allocation6 + $0x1]]
      %v286 = vstv %s285
      %v287 = vadd.f32 %v281, %v286
      %v288 = vadd.f32 %v282, %v286
      %v289 = vadd.f32 %v283, %v286
      %v290 = vadd.f32 %v284, %v286
      %s291 = sadd.s32 %s58, 832
      %s292 = scalar_lea.vmem [#allocation9], %s291
      %293 = vst [vmem:[%s292] sm:$0xff] %v287
      %294 = vst [vmem:[%s292 + $0x8] sm:$0xff] %v288
      %295 = vst [vmem:[%s292 + $0x10] sm:$0xff] %v289
      %296 = vst [vmem:[%s292 + $0x18] sm:$0x3] %v290
      %s297 = sld [smem:[#allocation2 + $0x100]]
      %v298 = vstv %s297
      %v299 = vmul.f32 %v60, %v298
      %v300 = vmul.f32 %v61, %v298
      %v301 = vmul.f32 %v62, %v298
      %v302 = vmul.f32 %v63, %v298
      %s303 = sld [smem:[#allocation2 + $0x101]]
      %v304 = vstv %s303
      %v305 = vmul.f32 %v64, %v304
      %v306 = vmul.f32 %v65, %v304
      %v307 = vmul.f32 %v66, %v304
      %v308 = vmul.f32 %v67, %v304
      %v309 = vadd.f32 %v299, %v305
      %v310 = vadd.f32 %v300, %v306
      %v311 = vadd.f32 %v301, %v307
      %v312 = vadd.f32 %v302, %v308
      %s313 = sld [smem:[#allocation2 + $0x102]]
      %v314 = vstv %s313
      %v315 = vmul.f32 %v68, %v314
      %v316 = vmul.f32 %v69, %v314
      %v317 = vmul.f32 %v70, %v314
      %v318 = vmul.f32 %v71, %v314
      %v319 = vadd.f32 %v309, %v315
      %v320 = vadd.f32 %v310, %v316
      %v321 = vadd.f32 %v311, %v317
      %v322 = vadd.f32 %v312, %v318
      %s323 = sld [smem:[#allocation2 + $0x103]]
      %v324 = vstv %s323
      %v325 = vmul.f32 %v75, %v324
      %v326 = vmul.f32 %v76, %v324
      %v327 = vmul.f32 %v77, %v324
      %v328 = vmul.f32 %v78, %v324
      %v329 = vadd.f32 %v319, %v325
      %v330 = vadd.f32 %v320, %v326
      %v331 = vadd.f32 %v321, %v327
      %v332 = vadd.f32 %v322, %v328
      %s333 = sld [smem:[#allocation2 + $0x104]]
      %v334 = vstv %s333
      %v335 = vmul.f32 %v79, %v334
      %v336 = vmul.f32 %v80, %v334
      %v337 = vmul.f32 %v81, %v334
      %v338 = vmul.f32 %v82, %v334
      %v339 = vadd.f32 %v329, %v335
      %v340 = vadd.f32 %v330, %v336
      %v341 = vadd.f32 %v331, %v337
      %v342 = vadd.f32 %v332, %v338
      %s343 = sld [smem:[#allocation2 + $0x105]]
      %v344 = vstv %s343
      %v345 = vmul.f32 %v83, %v344
      %v346 = vmul.f32 %v84, %v344
      %v347 = vmul.f32 %v85, %v344
      %v348 = vmul.f32 %v86, %v344
      %v349 = vadd.f32 %v339, %v345
      %v350 = vadd.f32 %v340, %v346
      %v351 = vadd.f32 %v341, %v347
      %v352 = vadd.f32 %v342, %v348
      %s353 = sld [smem:[#allocation2 + $0x106]]
      %v354 = vstv %s353
      %v355 = vmul.f32 %v90, %v354
      %v356 = vmul.f32 %v91, %v354
      %v357 = vmul.f32 %v92, %v354
      %v358 = vmul.f32 %v93, %v354
      %v359 = vadd.f32 %v349, %v355
      %v360 = vadd.f32 %v350, %v356
      %v361 = vadd.f32 %v351, %v357
      %v362 = vadd.f32 %v352, %v358
      %s363 = sld [smem:[#allocation2 + $0x107]]
      %v364 = vstv %s363
      %v365 = vmul.f32 %v94, %v364
      %v366 = vmul.f32 %v95, %v364
      %v367 = vmul.f32 %v96, %v364
      %v368 = vmul.f32 %v97, %v364
      %v369 = vadd.f32 %v359, %v365
      %v370 = vadd.f32 %v360, %v366
      %v371 = vadd.f32 %v361, %v367
      %v372 = vadd.f32 %v362, %v368
      %s373 = sld [smem:[#allocation2 + $0x108]]
      %v374 = vstv %s373
      %v375 = vmul.f32 %v98, %v374
      %v376 = vmul.f32 %v99, %v374
      %v377 = vmul.f32 %v100, %v374
      %v378 = vmul.f32 %v101, %v374
      %v379 = vadd.f32 %v369, %v375
      %v380 = vadd.f32 %v370, %v376
      %v381 = vadd.f32 %v371, %v377
      %v382 = vadd.f32 %v372, %v378
      %s383 = sld [smem:[#allocation6 + $0x2]]
      %v384 = vstv %s383
      %v385 = vadd.f32 %v379, %v384
      %v386 = vadd.f32 %v380, %v384
      %v387 = vadd.f32 %v381, %v384
      %v388 = vadd.f32 %v382, %v384
      %s389 = sadd.s32 %s58, 1664
      %s390 = scalar_lea.vmem [#allocation9], %s389
      %391 = vst [vmem:[%s390] sm:$0xff] %v385
      %392 = vst [vmem:[%s390 + $0x8] sm:$0xff] %v386
      %393 = vst [vmem:[%s390 + $0x10] sm:$0xff] %v387
      %394 = vst [vmem:[%s390 + $0x18] sm:$0x3] %v388
      %s395 = sld [smem:[#allocation2 + $0x180]]
      %v396 = vstv %s395
      %v397 = vmul.f32 %v60, %v396
      %v398 = vmul.f32 %v61, %v396
      %v399 = vmul.f32 %v62, %v396
      %v400 = vmul.f32 %v63, %v396
      %s401 = sld [smem:[#allocation2 + $0x181]]
      %v402 = vstv %s401
      %v403 = vmul.f32 %v64, %v402
      %v404 = vmul.f32 %v65, %v402
      %v405 = vmul.f32 %v66, %v402
      %v406 = vmul.f32 %v67, %v402
      %v407 = vadd.f32 %v397, %v403
      %v408 = vadd.f32 %v398, %v404
      %v409 = vadd.f32 %v399, %v405
      %v410 = vadd.f32 %v400, %v406
      %s411 = sld [smem:[#allocation2 + $0x182]]
      %v412 = vstv %s411
      %v413 = vmul.f32 %v68, %v412
      %v414 = vmul.f32 %v69, %v412
      %v415 = vmul.f32 %v70, %v412
      %v416 = vmul.f32 %v71, %v412
      %v417 = vadd.f32 %v407, %v413
      %v418 = vadd.f32 %v408, %v414
      %v419 = vadd.f32 %v409, %v415
      %v420 = vadd.f32 %v410, %v416
      %s421 = sld [smem:[#allocation2 + $0x183]]
      %v422 = vstv %s421
      %v423 = vmul.f32 %v75, %v422
      %v424 = vmul.f32 %v76, %v422
      %v425 = vmul.f32 %v77, %v422
      %v426 = vmul.f32 %v78, %v422
      %v427 = vadd.f32 %v417, %v423
      %v428 = vadd.f32 %v418, %v424
      %v429 = vadd.f32 %v419, %v425
      %v430 = vadd.f32 %v420, %v426
      %s431 = sld [smem:[#allocation2 + $0x184]]
      %v432 = vstv %s431
      %v433 = vmul.f32 %v79, %v432
      %v434 = vmul.f32 %v80, %v432
      %v435 = vmul.f32 %v81, %v432
      %v436 = vmul.f32 %v82, %v432
      %v437 = vadd.f32 %v427, %v433
      %v438 = vadd.f32 %v428, %v434
      %v439 = vadd.f32 %v429, %v435
      %v440 = vadd.f32 %v430, %v436
      %s441 = sld [smem:[#allocation2 + $0x185]]
      %v442 = vstv %s441
      %v443 = vmul.f32 %v83, %v442
      %v444 = vmul.f32 %v84, %v442
      %v445 = vmul.f32 %v85, %v442
      %v446 = vmul.f32 %v86, %v442
      %v447 = vadd.f32 %v437, %v443
      %v448 = vadd.f32 %v438, %v444
      %v449 = vadd.f32 %v439, %v445
      %v450 = vadd.f32 %v440, %v446
      %s451 = sld [smem:[#allocation2 + $0x186]]
      %v452 = vstv %s451
      %v453 = vmul.f32 %v90, %v452
      %v454 = vmul.f32 %v91, %v452
      %v455 = vmul.f32 %v92, %v452
      %v456 = vmul.f32 %v93, %v452
      %v457 = vadd.f32 %v447, %v453
      %v458 = vadd.f32 %v448, %v454
      %v459 = vadd.f32 %v449, %v455
      %v460 = vadd.f32 %v450, %v456
      %s461 = sld [smem:[#allocation2 + $0x187]]
      %v462 = vstv %s461
      %v463 = vmul.f32 %v94, %v462
      %v464 = vmul.f32 %v95, %v462
      %v465 = vmul.f32 %v96, %v462
      %v466 = vmul.f32 %v97, %v462
      %v467 = vadd.f32 %v457, %v463
      %v468 = vadd.f32 %v458, %v464
      %v469 = vadd.f32 %v459, %v465
      %v470 = vadd.f32 %v460, %v466
      %s471 = sld [smem:[#allocation2 + $0x188]]
      %v472 = vstv %s471
      %v473 = vmul.f32 %v98, %v472
      %v474 = vmul.f32 %v99, %v472
      %v475 = vmul.f32 %v100, %v472
      %v476 = vmul.f32 %v101, %v472
      %v477 = vadd.f32 %v467, %v473
      %v478 = vadd.f32 %v468, %v474
      %v479 = vadd.f32 %v469, %v475
      %v480 = vadd.f32 %v470, %v476
      %s481 = sld [smem:[#allocation6 + $0x3]]
      %v482 = vstv %s481
      %v483 = vadd.f32 %v477, %v482
      %v484 = vadd.f32 %v478, %v482
      %v485 = vadd.f32 %v479, %v482
      %v486 = vadd.f32 %v480, %v482
      %s487 = sadd.s32 %s58, 2496
      %s488 = scalar_lea.vmem [#allocation9], %s487
      %489 = vst [vmem:[%s488] sm:$0xff] %v483
      %490 = vst [vmem:[%s488 + $0x8] sm:$0xff] %v484
      %491 = vst [vmem:[%s488 + $0x10] sm:$0xff] %v485
      %492 = vst [vmem:[%s488 + $0x18] sm:$0x3] %v486
      %s493 = sld [smem:[#allocation2 + $0x200]]
      %v494 = vstv %s493
      %v495 = vmul.f32 %v60, %v494
      %v496 = vmul.f32 %v61, %v494
      %v497 = vmul.f32 %v62, %v494
      %v498 = vmul.f32 %v63, %v494
      %s499 = sld [smem:[#allocation2 + $0x201]]
      %v500 = vstv %s499
      %v501 = vmul.f32 %v64, %v500
      %v502 = vmul.f32 %v65, %v500
      %v503 = vmul.f32 %v66, %v500
      %v504 = vmul.f32 %v67, %v500
      %v505 = vadd.f32 %v495, %v501
      %v506 = vadd.f32 %v496, %v502
      %v507 = vadd.f32 %v497, %v503
      %v508 = vadd.f32 %v498, %v504
      %s509 = sld [smem:[#allocation2 + $0x202]]
      %v510 = vstv %s509
      %v511 = vmul.f32 %v68, %v510
      %v512 = vmul.f32 %v69, %v510
      %v513 = vmul.f32 %v70, %v510
      %v514 = vmul.f32 %v71, %v510
      %v515 = vadd.f32 %v505, %v511
      %v516 = vadd.f32 %v506, %v512
      %v517 = vadd.f32 %v507, %v513
      %v518 = vadd.f32 %v508, %v514
      %s519 = sld [smem:[#allocation2 + $0x203]]
      %v520 = vstv %s519
      %v521 = vmul.f32 %v75, %v520
      %v522 = vmul.f32 %v76, %v520
      %v523 = vmul.f32 %v77, %v520
      %v524 = vmul.f32 %v78, %v520
      %v525 = vadd.f32 %v515, %v521
      %v526 = vadd.f32 %v516, %v522
      %v527 = vadd.f32 %v517, %v523
      %v528 = vadd.f32 %v518, %v524
      %s529 = sld [smem:[#allocation2 + $0x204]]
      %v530 = vstv %s529
      %v531 = vmul.f32 %v79, %v530
      %v532 = vmul.f32 %v80, %v530
      %v533 = vmul.f32 %v81, %v530
      %v534 = vmul.f32 %v82, %v530
      %v535 = vadd.f32 %v525, %v531
      %v536 = vadd.f32 %v526, %v532
      %v537 = vadd.f32 %v527, %v533
      %v538 = vadd.f32 %v528, %v534
      %s539 = sld [smem:[#allocation2 + $0x205]]
      %v540 = vstv %s539
      %v541 = vmul.f32 %v83, %v540
      %v542 = vmul.f32 %v84, %v540
      %v543 = vmul.f32 %v85, %v540
      %v544 = vmul.f32 %v86, %v540
      %v545 = vadd.f32 %v535, %v541
      %v546 = vadd.f32 %v536, %v542
      %v547 = vadd.f32 %v537, %v543
      %v548 = vadd.f32 %v538, %v544
      %s549 = sld [smem:[#allocation2 + $0x206]]
      %v550 = vstv %s549
      %v551 = vmul.f32 %v90, %v550
      %v552 = vmul.f32 %v91, %v550
      %v553 = vmul.f32 %v92, %v550
      %v554 = vmul.f32 %v93, %v550
      %v555 = vadd.f32 %v545, %v551
      %v556 = vadd.f32 %v546, %v552
      %v557 = vadd.f32 %v547, %v553
      %v558 = vadd.f32 %v548, %v554
      %s559 = sld [smem:[#allocation2 + $0x207]]
      %v560 = vstv %s559
      %v561 = vmul.f32 %v94, %v560
      %v562 = vmul.f32 %v95, %v560
      %v563 = vmul.f32 %v96, %v560
      %v564 = vmul.f32 %v97, %v560
      %v565 = vadd.f32 %v555, %v561
      %v566 = vadd.f32 %v556, %v562
      %v567 = vadd.f32 %v557, %v563
      %v568 = vadd.f32 %v558, %v564
      %s569 = sld [smem:[#allocation2 + $0x208]]
      %v570 = vstv %s569
      %v571 = vmul.f32 %v98, %v570
      %v572 = vmul.f32 %v99, %v570
      %v573 = vmul.f32 %v100, %v570
      %v574 = vmul.f32 %v101, %v570
      %v575 = vadd.f32 %v565, %v571
      %v576 = vadd.f32 %v566, %v572
      %v577 = vadd.f32 %v567, %v573
      %v578 = vadd.f32 %v568, %v574
      %s579 = sld [smem:[#allocation6 + $0x4]]
      %v580 = vstv %s579
      %v581 = vadd.f32 %v575, %v580
      %v582 = vadd.f32 %v576, %v580
      %v583 = vadd.f32 %v577, %v580
      %v584 = vadd.f32 %v578, %v580
      %s585 = sadd.s32 %s58, 3328
      %s586 = scalar_lea.vmem [#allocation9], %s585
      %587 = vst [vmem:[%s586] sm:$0xff] %v581
      %588 = vst [vmem:[%s586 + $0x8] sm:$0xff] %v582
      %589 = vst [vmem:[%s586 + $0x10] sm:$0xff] %v583
      %590 = vst [vmem:[%s586 + $0x18] sm:$0x3] %v584
      %s591 = sld [smem:[#allocation2 + $0x280]]
      %v592 = vstv %s591
      %v593 = vmul.f32 %v60, %v592
      %v594 = vmul.f32 %v61, %v592
      %v595 = vmul.f32 %v62, %v592
      %v596 = vmul.f32 %v63, %v592
      %s597 = sld [smem:[#allocation2 + $0x281]]
      %v598 = vstv %s597
      %v599 = vmul.f32 %v64, %v598
      %v600 = vmul.f32 %v65, %v598
      %v601 = vmul.f32 %v66, %v598
      %v602 = vmul.f32 %v67, %v598
      %v603 = vadd.f32 %v593, %v599
      %v604 = vadd.f32 %v594, %v600
      %v605 = vadd.f32 %v595, %v601
      %v606 = vadd.f32 %v596, %v602
      %s607 = sld [smem:[#allocation2 + $0x282]]
      %v608 = vstv %s607
      %v609 = vmul.f32 %v68, %v608
      %v610 = vmul.f32 %v69, %v608
      %v611 = vmul.f32 %v70, %v608
      %v612 = vmul.f32 %v71, %v608
      %v613 = vadd.f32 %v603, %v609
      %v614 = vadd.f32 %v604, %v610
      %v615 = vadd.f32 %v605, %v611
      %v616 = vadd.f32 %v606, %v612
      %s617 = sld [smem:[#allocation2 + $0x283]]
      %v618 = vstv %s617
      %v619 = vmul.f32 %v75, %v618
      %v620 = vmul.f32 %v76, %v618
      %v621 = vmul.f32 %v77, %v618
      %v622 = vmul.f32 %v78, %v618
      %v623 = vadd.f32 %v613, %v619
      %v624 = vadd.f32 %v614, %v620
      %v625 = vadd.f32 %v615, %v621
      %v626 = vadd.f32 %v616, %v622
      %s627 = sld [smem:[#allocation2 + $0x284]]
      %v628 = vstv %s627
      %v629 = vmul.f32 %v79, %v628
      %v630 = vmul.f32 %v80, %v628
      %v631 = vmul.f32 %v81, %v628
      %v632 = vmul.f32 %v82, %v628
      %v633 = vadd.f32 %v623, %v629
      %v634 = vadd.f32 %v624, %v630
      %v635 = vadd.f32 %v625, %v631
      %v636 = vadd.f32 %v626, %v632
      %s637 = sld [smem:[#allocation2 + $0x285]]
      %v638 = vstv %s637
      %v639 = vmul.f32 %v83, %v638
      %v640 = vmul.f32 %v84, %v638
      %v641 = vmul.f32 %v85, %v638
      %v642 = vmul.f32 %v86, %v638
      %v643 = vadd.f32 %v633, %v639
      %v644 = vadd.f32 %v634, %v640
      %v645 = vadd.f32 %v635, %v641
      %v646 = vadd.f32 %v636, %v642
      %s647 = sld [smem:[#allocation2 + $0x286]]
      %v648 = vstv %s647
      %v649 = vmul.f32 %v90, %v648
      %v650 = vmul.f32 %v91, %v648
      %v651 = vmul.f32 %v92, %v648
      %v652 = vmul.f32 %v93, %v648
      %v653 = vadd.f32 %v643, %v649
      %v654 = vadd.f32 %v644, %v650
      %v655 = vadd.f32 %v645, %v651
      %v656 = vadd.f32 %v646, %v652
      %s657 = sld [smem:[#allocation2 + $0x287]]
      %v658 = vstv %s657
      %v659 = vmul.f32 %v94, %v658
      %v660 = vmul.f32 %v95, %v658
      %v661 = vmul.f32 %v96, %v658
      %v662 = vmul.f32 %v97, %v658
      %v663 = vadd.f32 %v653, %v659
      %v664 = vadd.f32 %v654, %v660
      %v665 = vadd.f32 %v655, %v661
      %v666 = vadd.f32 %v656, %v662
      %s667 = sld [smem:[#allocation2 + $0x288]]
      %v668 = vstv %s667
      %v669 = vmul.f32 %v98, %v668
      %v670 = vmul.f32 %v99, %v668
      %v671 = vmul.f32 %v100, %v668
      %v672 = vmul.f32 %v101, %v668
      %v673 = vadd.f32 %v663, %v669
      %v674 = vadd.f32 %v664, %v670
      %v675 = vadd.f32 %v665, %v671
      %v676 = vadd.f32 %v666, %v672
      %s677 = sld [smem:[#allocation6 + $0x5]]
      %v678 = vstv %s677
      %v679 = vadd.f32 %v673, %v678
      %v680 = vadd.f32 %v674, %v678
      %v681 = vadd.f32 %v675, %v678
      %v682 = vadd.f32 %v676, %v678
      %s683 = sadd.s32 %s58, 4160
      %s684 = scalar_lea.vmem [#allocation9], %s683
      %685 = vst [vmem:[%s684] sm:$0xff] %v679
      %686 = vst [vmem:[%s684 + $0x8] sm:$0xff] %v680
      %687 = vst [vmem:[%s684 + $0x10] sm:$0xff] %v681
      %688 = vst [vmem:[%s684 + $0x18] sm:$0x3] %v682
      %s689 = sld [smem:[#allocation2 + $0x300]]
      %v690 = vstv %s689
      %v691 = vmul.f32 %v60, %v690
      %v692 = vmul.f32 %v61, %v690
      %v693 = vmul.f32 %v62, %v690
      %v694 = vmul.f32 %v63, %v690
      %s695 = sld [smem:[#allocation2 + $0x301]]
      %v696 = vstv %s695
      %v697 = vmul.f32 %v64, %v696
      %v698 = vmul.f32 %v65, %v696
      %v699 = vmul.f32 %v66, %v696
      %v700 = vmul.f32 %v67, %v696
      %v701 = vadd.f32 %v691, %v697
      %v702 = vadd.f32 %v692, %v698
      %v703 = vadd.f32 %v693, %v699
      %v704 = vadd.f32 %v694, %v700
      %s705 = sld [smem:[#allocation2 + $0x302]]
      %v706 = vstv %s705
      %v707 = vmul.f32 %v68, %v706
      %v708 = vmul.f32 %v69, %v706
      %v709 = vmul.f32 %v70, %v706
      %v710 = vmul.f32 %v71, %v706
      %v711 = vadd.f32 %v701, %v707
      %v712 = vadd.f32 %v702, %v708
      %v713 = vadd.f32 %v703, %v709
      %v714 = vadd.f32 %v704, %v710
      %s715 = sld [smem:[#allocation2 + $0x303]]
      %v716 = vstv %s715
      %v717 = vmul.f32 %v75, %v716
      %v718 = vmul.f32 %v76, %v716
      %v719 = vmul.f32 %v77, %v716
      %v720 = vmul.f32 %v78, %v716
      %v721 = vadd.f32 %v711, %v717
      %v722 = vadd.f32 %v712, %v718
      %v723 = vadd.f32 %v713, %v719
      %v724 = vadd.f32 %v714, %v720
      %s725 = sld [smem:[#allocation2 + $0x304]]
      %v726 = vstv %s725
      %v727 = vmul.f32 %v79, %v726
      %v728 = vmul.f32 %v80, %v726
      %v729 = vmul.f32 %v81, %v726
      %v730 = vmul.f32 %v82, %v726
      %v731 = vadd.f32 %v721, %v727
      %v732 = vadd.f32 %v722, %v728
      %v733 = vadd.f32 %v723, %v729
      %v734 = vadd.f32 %v724, %v730
      %s735 = sld [smem:[#allocation2 + $0x305]]
      %v736 = vstv %s735
      %v737 = vmul.f32 %v83, %v736
      %v738 = vmul.f32 %v84, %v736
      %v739 = vmul.f32 %v85, %v736
      %v740 = vmul.f32 %v86, %v736
      %v741 = vadd.f32 %v731, %v737
      %v742 = vadd.f32 %v732, %v738
      %v743 = vadd.f32 %v733, %v739
      %v744 = vadd.f32 %v734, %v740
      %s745 = sld [smem:[#allocation2 + $0x306]]
      %v746 = vstv %s745
      %v747 = vmul.f32 %v90, %v746
      %v748 = vmul.f32 %v91, %v746
      %v749 = vmul.f32 %v92, %v746
      %v750 = vmul.f32 %v93, %v746
      %v751 = vadd.f32 %v741, %v747
      %v752 = vadd.f32 %v742, %v748
      %v753 = vadd.f32 %v743, %v749
      %v754 = vadd.f32 %v744, %v750
      %s755 = sld [smem:[#allocation2 + $0x307]]
      %v756 = vstv %s755
      %v757 = vmul.f32 %v94, %v756
      %v758 = vmul.f32 %v95, %v756
      %v759 = vmul.f32 %v96, %v756
      %v760 = vmul.f32 %v97, %v756
      %v761 = vadd.f32 %v751, %v757
      %v762 = vadd.f32 %v752, %v758
      %v763 = vadd.f32 %v753, %v759
      %v764 = vadd.f32 %v754, %v760
      %s765 = sld [smem:[#allocation2 + $0x308]]
      %v766 = vstv %s765
      %v767 = vmul.f32 %v98, %v766
      %v768 = vmul.f32 %v99, %v766
      %v769 = vmul.f32 %v100, %v766
      %v770 = vmul.f32 %v101, %v766
      %v771 = vadd.f32 %v761, %v767
      %v772 = vadd.f32 %v762, %v768
      %v773 = vadd.f32 %v763, %v769
      %v774 = vadd.f32 %v764, %v770
      %s775 = sld [smem:[#allocation6 + $0x6]]
      %v776 = vstv %s775
      %v777 = vadd.f32 %v771, %v776
      %v778 = vadd.f32 %v772, %v776
      %v779 = vadd.f32 %v773, %v776
      %v780 = vadd.f32 %v774, %v776
      %s781 = sadd.s32 %s58, 4992
      %s782 = scalar_lea.vmem [#allocation9], %s781
      %783 = vst [vmem:[%s782] sm:$0xff] %v777
      %784 = vst [vmem:[%s782 + $0x8] sm:$0xff] %v778
      %785 = vst [vmem:[%s782 + $0x10] sm:$0xff] %v779
      %786 = vst [vmem:[%s782 + $0x18] sm:$0x3] %v780
      %s787 = sld [smem:[#allocation2 + $0x380]]
      %v788 = vstv %s787
      %v789 = vmul.f32 %v60, %v788
      %v790 = vmul.f32 %v61, %v788
      %v791 = vmul.f32 %v62, %v788
      %v792 = vmul.f32 %v63, %v788
      %s793 = sld [smem:[#allocation2 + $0x381]]
      %v794 = vstv %s793
      %v795 = vmul.f32 %v64, %v794
      %v796 = vmul.f32 %v65, %v794
      %v797 = vmul.f32 %v66, %v794
      %v798 = vmul.f32 %v67, %v794
      %v799 = vadd.f32 %v789, %v795
      %v800 = vadd.f32 %v790, %v796
      %v801 = vadd.f32 %v791, %v797
      %v802 = vadd.f32 %v792, %v798
      %s803 = sld [smem:[#allocation2 + $0x382]]
      %v804 = vstv %s803
      %v805 = vmul.f32 %v68, %v804
      %v806 = vmul.f32 %v69, %v804
      %v807 = vmul.f32 %v70, %v804
      %v808 = vmul.f32 %v71, %v804
      %v809 = vadd.f32 %v799, %v805
      %v810 = vadd.f32 %v800, %v806
      %v811 = vadd.f32 %v801, %v807
      %v812 = vadd.f32 %v802, %v808
      %s813 = sld [smem:[#allocation2 + $0x383]]
      %v814 = vstv %s813
      %v815 = vmul.f32 %v75, %v814
      %v816 = vmul.f32 %v76, %v814
      %v817 = vmul.f32 %v77, %v814
      %v818 = vmul.f32 %v78, %v814
      %v819 = vadd.f32 %v809, %v815
      %v820 = vadd.f32 %v810, %v816
      %v821 = vadd.f32 %v811, %v817
      %v822 = vadd.f32 %v812, %v818
      %s823 = sld [smem:[#allocation2 + $0x384]]
      %v824 = vstv %s823
      %v825 = vmul.f32 %v79, %v824
      %v826 = vmul.f32 %v80, %v824
      %v827 = vmul.f32 %v81, %v824
      %v828 = vmul.f32 %v82, %v824
      %v829 = vadd.f32 %v819, %v825
      %v830 = vadd.f32 %v820, %v826
      %v831 = vadd.f32 %v821, %v827
      %v832 = vadd.f32 %v822, %v828
      %s833 = sld [smem:[#allocation2 + $0x385]]
      %v834 = vstv %s833
      %v835 = vmul.f32 %v83, %v834
      %v836 = vmul.f32 %v84, %v834
      %v837 = vmul.f32 %v85, %v834
      %v838 = vmul.f32 %v86, %v834
      %v839 = vadd.f32 %v829, %v835
      %v840 = vadd.f32 %v830, %v836
      %v841 = vadd.f32 %v831, %v837
      %v842 = vadd.f32 %v832, %v838
      %s843 = sld [smem:[#allocation2 + $0x386]]
      %v844 = vstv %s843
      %v845 = vmul.f32 %v90, %v844
      %v846 = vmul.f32 %v91, %v844
      %v847 = vmul.f32 %v92, %v844
      %v848 = vmul.f32 %v93, %v844
      %v849 = vadd.f32 %v839, %v845
      %v850 = vadd.f32 %v840, %v846
      %v851 = vadd.f32 %v841, %v847
      %v852 = vadd.f32 %v842, %v848
      %s853 = sld [smem:[#allocation2 + $0x387]]
      %v854 = vstv %s853
      %v855 = vmul.f32 %v94, %v854
      %v856 = vmul.f32 %v95, %v854
      %v857 = vmul.f32 %v96, %v854
      %v858 = vmul.f32 %v97, %v854
      %v859 = vadd.f32 %v849, %v855
      %v860 = vadd.f32 %v850, %v856
      %v861 = vadd.f32 %v851, %v857
      %v862 = vadd.f32 %v852, %v858
      %s863 = sld [smem:[#allocation2 + $0x388]]
      %v864 = vstv %s863
      %v865 = vmul.f32 %v98, %v864
      %v866 = vmul.f32 %v99, %v864
      %v867 = vmul.f32 %v100, %v864
      %v868 = vmul.f32 %v101, %v864
      %v869 = vadd.f32 %v859, %v865
      %v870 = vadd.f32 %v860, %v866
      %v871 = vadd.f32 %v861, %v867
      %v872 = vadd.f32 %v862, %v868
      %s873 = sld [smem:[#allocation6 + $0x7]]
      %v874 = vstv %s873
      %v875 = vadd.f32 %v869, %v874
      %v876 = vadd.f32 %v870, %v874
      %v877 = vadd.f32 %v871, %v874
      %v878 = vadd.f32 %v872, %v874
      %s879 = sadd.s32 %s58, 5824
      %s880 = scalar_lea.vmem [#allocation9], %s879
      %881 = vst [vmem:[%s880] sm:$0xff] %v875
      %882 = vst [vmem:[%s880 + $0x8] sm:$0xff] %v876
      %883 = vst [vmem:[%s880 + $0x10] sm:$0xff] %v877
      %884 = vst [vmem:[%s880 + $0x18] sm:$0x3] %v878
      %s885 = sld [smem:[#allocation2 + $0x400]]
      %v886 = vstv %s885
      %v887 = vmul.f32 %v60, %v886
      %v888 = vmul.f32 %v61, %v886
      %v889 = vmul.f32 %v62, %v886
      %v890 = vmul.f32 %v63, %v886
      %s891 = sld [smem:[#allocation2 + $0x401]]
      %v892 = vstv %s891
      %v893 = vmul.f32 %v64, %v892
      %v894 = vmul.f32 %v65, %v892
      %v895 = vmul.f32 %v66, %v892
      %v896 = vmul.f32 %v67, %v892
      %v897 = vadd.f32 %v887, %v893
      %v898 = vadd.f32 %v888, %v894
      %v899 = vadd.f32 %v889, %v895
      %v900 = vadd.f32 %v890, %v896
      %s901 = sld [smem:[#allocation2 + $0x402]]
      %v902 = vstv %s901
      %v903 = vmul.f32 %v68, %v902
      %v904 = vmul.f32 %v69, %v902
      %v905 = vmul.f32 %v70, %v902
      %v906 = vmul.f32 %v71, %v902
      %v907 = vadd.f32 %v897, %v903
      %v908 = vadd.f32 %v898, %v904
      %v909 = vadd.f32 %v899, %v905
      %v910 = vadd.f32 %v900, %v906
      %s911 = sld [smem:[#allocation2 + $0x403]]
      %v912 = vstv %s911
      %v913 = vmul.f32 %v75, %v912
      %v914 = vmul.f32 %v76, %v912
      %v915 = vmul.f32 %v77, %v912
      %v916 = vmul.f32 %v78, %v912
      %v917 = vadd.f32 %v907, %v913
      %v918 = vadd.f32 %v908, %v914
      %v919 = vadd.f32 %v909, %v915
      %v920 = vadd.f32 %v910, %v916
      %s921 = sld [smem:[#allocation2 + $0x404]]
      %v922 = vstv %s921
      %v923 = vmul.f32 %v79, %v922
      %v924 = vmul.f32 %v80, %v922
      %v925 = vmul.f32 %v81, %v922
      %v926 = vmul.f32 %v82, %v922
      %v927 = vadd.f32 %v917, %v923
      %v928 = vadd.f32 %v918, %v924
      %v929 = vadd.f32 %v919, %v925
      %v930 = vadd.f32 %v920, %v926
      %s931 = sld [smem:[#allocation2 + $0x405]]
      %v932 = vstv %s931
      %v933 = vmul.f32 %v83, %v932
      %v934 = vmul.f32 %v84, %v932
      %v935 = vmul.f32 %v85, %v932
      %v936 = vmul.f32 %v86, %v932
      %v937 = vadd.f32 %v927, %v933
      %v938 = vadd.f32 %v928, %v934
      %v939 = vadd.f32 %v929, %v935
      %v940 = vadd.f32 %v930, %v936
      %s941 = sld [smem:[#allocation2 + $0x406]]
      %v942 = vstv %s941
      %v943 = vmul.f32 %v90, %v942
      %v944 = vmul.f32 %v91, %v942
      %v945 = vmul.f32 %v92, %v942
      %v946 = vmul.f32 %v93, %v942
      %v947 = vadd.f32 %v937, %v943
      %v948 = vadd.f32 %v938, %v944
      %v949 = vadd.f32 %v939, %v945
      %v950 = vadd.f32 %v940, %v946
      %s951 = sld [smem:[#allocation2 + $0x407]]
      %v952 = vstv %s951
      %v953 = vmul.f32 %v94, %v952
      %v954 = vmul.f32 %v95, %v952
      %v955 = vmul.f32 %v96, %v952
      %v956 = vmul.f32 %v97, %v952
      %v957 = vadd.f32 %v947, %v953
      %v958 = vadd.f32 %v948, %v954
      %v959 = vadd.f32 %v949, %v955
      %v960 = vadd.f32 %v950, %v956
      %s961 = sld [smem:[#allocation2 + $0x408]]
      %v962 = vstv %s961
      %v963 = vmul.f32 %v98, %v962
      %v964 = vmul.f32 %v99, %v962
      %v965 = vmul.f32 %v100, %v962
      %v966 = vmul.f32 %v101, %v962
      %v967 = vadd.f32 %v957, %v963
      %v968 = vadd.f32 %v958, %v964
      %v969 = vadd.f32 %v959, %v965
      %v970 = vadd.f32 %v960, %v966
      %s971 = sld [smem:[#allocation6 + $0x8]]
      %v972 = vstv %s971
      %v973 = vadd.f32 %v967, %v972
      %v974 = vadd.f32 %v968, %v972
      %v975 = vadd.f32 %v969, %v972
      %v976 = vadd.f32 %v970, %v972
      %s977 = sadd.s32 %s58, 6656
      %s978 = scalar_lea.vmem [#allocation9], %s977
      %979 = vst [vmem:[%s978] sm:$0xff] %v973
      %980 = vst [vmem:[%s978 + $0x8] sm:$0xff] %v974
      %981 = vst [vmem:[%s978 + $0x10] sm:$0xff] %v975
      %982 = vst [vmem:[%s978 + $0x18] sm:$0x3] %v976
      %s983 = sld [smem:[#allocation2 + $0x480]]
      %v984 = vstv %s983
      %v985 = vmul.f32 %v60, %v984
      %v986 = vmul.f32 %v61, %v984
      %v987 = vmul.f32 %v62, %v984
      %v988 = vmul.f32 %v63, %v984
      %s989 = sld [smem:[#allocation2 + $0x481]]
      %v990 = vstv %s989
      %v991 = vmul.f32 %v64, %v990
      %v992 = vmul.f32 %v65, %v990
      %v993 = vmul.f32 %v66, %v990
      %v994 = vmul.f32 %v67, %v990
      %v995 = vadd.f32 %v985, %v991
      %v996 = vadd.f32 %v986, %v992
      %v997 = vadd.f32 %v987, %v993
      %v998 = vadd.f32 %v988, %v994
      %s999 = sld [smem:[#allocation2 + $0x482]]
      %v1000 = vstv %s999
      %v1001 = vmul.f32 %v68, %v1000
      %v1002 = vmul.f32 %v69, %v1000
      %v1003 = vmul.f32 %v70, %v1000
      %v1004 = vmul.f32 %v71, %v1000
      %v1005 = vadd.f32 %v995, %v1001
      %v1006 = vadd.f32 %v996, %v1002
      %v1007 = vadd.f32 %v997, %v1003
      %v1008 = vadd.f32 %v998, %v1004
      %s1009 = sld [smem:[#allocation2 + $0x483]]
      %v1010 = vstv %s1009
      %v1011 = vmul.f32 %v75, %v1010
      %v1012 = vmul.f32 %v76, %v1010
      %v1013 = vmul.f32 %v77, %v1010
      %v1014 = vmul.f32 %v78, %v1010
      %v1015 = vadd.f32 %v1005, %v1011
      %v1016 = vadd.f32 %v1006, %v1012
      %v1017 = vadd.f32 %v1007, %v1013
      %v1018 = vadd.f32 %v1008, %v1014
      %s1019 = sld [smem:[#allocation2 + $0x484]]
      %v1020 = vstv %s1019
      %v1021 = vmul.f32 %v79, %v1020
      %v1022 = vmul.f32 %v80, %v1020
      %v1023 = vmul.f32 %v81, %v1020
      %v1024 = vmul.f32 %v82, %v1020
      %v1025 = vadd.f32 %v1015, %v1021
      %v1026 = vadd.f32 %v1016, %v1022
      %v1027 = vadd.f32 %v1017, %v1023
      %v1028 = vadd.f32 %v1018, %v1024
      %s1029 = sld [smem:[#allocation2 + $0x485]]
      %v1030 = vstv %s1029
      %v1031 = vmul.f32 %v83, %v1030
      %v1032 = vmul.f32 %v84, %v1030
      %v1033 = vmul.f32 %v85, %v1030
      %v1034 = vmul.f32 %v86, %v1030
      %v1035 = vadd.f32 %v1025, %v1031
      %v1036 = vadd.f32 %v1026, %v1032
      %v1037 = vadd.f32 %v1027, %v1033
      %v1038 = vadd.f32 %v1028, %v1034
      %s1039 = sld [smem:[#allocation2 + $0x486]]
      %v1040 = vstv %s1039
      %v1041 = vmul.f32 %v90, %v1040
      %v1042 = vmul.f32 %v91, %v1040
      %v1043 = vmul.f32 %v92, %v1040
      %v1044 = vmul.f32 %v93, %v1040
      %v1045 = vadd.f32 %v1035, %v1041
      %v1046 = vadd.f32 %v1036, %v1042
      %v1047 = vadd.f32 %v1037, %v1043
      %v1048 = vadd.f32 %v1038, %v1044
      %s1049 = sld [smem:[#allocation2 + $0x487]]
      %v1050 = vstv %s1049
      %v1051 = vmul.f32 %v94, %v1050
      %v1052 = vmul.f32 %v95, %v1050
      %v1053 = vmul.f32 %v96, %v1050
      %v1054 = vmul.f32 %v97, %v1050
      %v1055 = vadd.f32 %v1045, %v1051
      %v1056 = vadd.f32 %v1046, %v1052
      %v1057 = vadd.f32 %v1047, %v1053
      %v1058 = vadd.f32 %v1048, %v1054
      %s1059 = sld [smem:[#allocation2 + $0x488]]
      %v1060 = vstv %s1059
      %v1061 = vmul.f32 %v98, %v1060
      %v1062 = vmul.f32 %v99, %v1060
      %v1063 = vmul.f32 %v100, %v1060
      %v1064 = vmul.f32 %v101, %v1060
      %v1065 = vadd.f32 %v1055, %v1061
      %v1066 = vadd.f32 %v1056, %v1062
      %v1067 = vadd.f32 %v1057, %v1063
      %v1068 = vadd.f32 %v1058, %v1064
      %s1069 = sld [smem:[#allocation6 + $0x9]]
      %v1070 = vstv %s1069
      %v1071 = vadd.f32 %v1065, %v1070
      %v1072 = vadd.f32 %v1066, %v1070
      %v1073 = vadd.f32 %v1067, %v1070
      %v1074 = vadd.f32 %v1068, %v1070
      %s1075 = sadd.s32 %s58, 7488
      %s1076 = scalar_lea.vmem [#allocation9], %s1075
      %1077 = vst [vmem:[%s1076] sm:$0xff] %v1071
      %1078 = vst [vmem:[%s1076 + $0x8] sm:$0xff] %v1072
      %1079 = vst [vmem:[%s1076 + $0x10] sm:$0xff] %v1073
      %1080 = vst [vmem:[%s1076 + $0x18] sm:$0x3] %v1074
      %s1081 = sld [smem:[#allocation2 + $0x500]]
      %v1082 = vstv %s1081
      %v1083 = vmul.f32 %v60, %v1082
      %v1084 = vmul.f32 %v61, %v1082
      %v1085 = vmul.f32 %v62, %v1082
      %v1086 = vmul.f32 %v63, %v1082
      %s1087 = sld [smem:[#allocation2 + $0x501]]
      %v1088 = vstv %s1087
      %v1089 = vmul.f32 %v64, %v1088
      %v1090 = vmul.f32 %v65, %v1088
      %v1091 = vmul.f32 %v66, %v1088
      %v1092 = vmul.f32 %v67, %v1088
      %v1093 = vadd.f32 %v1083, %v1089
      %v1094 = vadd.f32 %v1084, %v1090
      %v1095 = vadd.f32 %v1085, %v1091
      %v1096 = vadd.f32 %v1086, %v1092
      %s1097 = sld [smem:[#allocation2 + $0x502]]
      %v1098 = vstv %s1097
      %v1099 = vmul.f32 %v68, %v1098
      %v1100 = vmul.f32 %v69, %v1098
      %v1101 = vmul.f32 %v70, %v1098
      %v1102 = vmul.f32 %v71, %v1098
      %v1103 = vadd.f32 %v1093, %v1099
      %v1104 = vadd.f32 %v1094, %v1100
      %v1105 = vadd.f32 %v1095, %v1101
      %v1106 = vadd.f32 %v1096, %v1102
      %s1107 = sld [smem:[#allocation2 + $0x503]]
      %v1108 = vstv %s1107
      %v1109 = vmul.f32 %v75, %v1108
      %v1110 = vmul.f32 %v76, %v1108
      %v1111 = vmul.f32 %v77, %v1108
      %v1112 = vmul.f32 %v78, %v1108
      %v1113 = vadd.f32 %v1103, %v1109
      %v1114 = vadd.f32 %v1104, %v1110
      %v1115 = vadd.f32 %v1105, %v1111
      %v1116 = vadd.f32 %v1106, %v1112
      %s1117 = sld [smem:[#allocation2 + $0x504]]
      %v1118 = vstv %s1117
      %v1119 = vmul.f32 %v79, %v1118
      %v1120 = vmul.f32 %v80, %v1118
      %v1121 = vmul.f32 %v81, %v1118
      %v1122 = vmul.f32 %v82, %v1118
      %v1123 = vadd.f32 %v1113, %v1119
      %v1124 = vadd.f32 %v1114, %v1120
      %v1125 = vadd.f32 %v1115, %v1121
      %v1126 = vadd.f32 %v1116, %v1122
      %s1127 = sld [smem:[#allocation2 + $0x505]]
      %v1128 = vstv %s1127
      %v1129 = vmul.f32 %v83, %v1128
      %v1130 = vmul.f32 %v84, %v1128
      %v1131 = vmul.f32 %v85, %v1128
      %v1132 = vmul.f32 %v86, %v1128
      %v1133 = vadd.f32 %v1123, %v1129
      %v1134 = vadd.f32 %v1124, %v1130
      %v1135 = vadd.f32 %v1125, %v1131
      %v1136 = vadd.f32 %v1126, %v1132
      %s1137 = sld [smem:[#allocation2 + $0x506]]
      %v1138 = vstv %s1137
      %v1139 = vmul.f32 %v90, %v1138
      %v1140 = vmul.f32 %v91, %v1138
      %v1141 = vmul.f32 %v92, %v1138
      %v1142 = vmul.f32 %v93, %v1138
      %v1143 = vadd.f32 %v1133, %v1139
      %v1144 = vadd.f32 %v1134, %v1140
      %v1145 = vadd.f32 %v1135, %v1141
      %v1146 = vadd.f32 %v1136, %v1142
      %s1147 = sld [smem:[#allocation2 + $0x507]]
      %v1148 = vstv %s1147
      %v1149 = vmul.f32 %v94, %v1148
      %v1150 = vmul.f32 %v95, %v1148
      %v1151 = vmul.f32 %v96, %v1148
      %v1152 = vmul.f32 %v97, %v1148
      %v1153 = vadd.f32 %v1143, %v1149
      %v1154 = vadd.f32 %v1144, %v1150
      %v1155 = vadd.f32 %v1145, %v1151
      %v1156 = vadd.f32 %v1146, %v1152
      %s1157 = sld [smem:[#allocation2 + $0x508]]
      %v1158 = vstv %s1157
      %v1159 = vmul.f32 %v98, %v1158
      %v1160 = vmul.f32 %v99, %v1158
      %v1161 = vmul.f32 %v100, %v1158
      %v1162 = vmul.f32 %v101, %v1158
      %v1163 = vadd.f32 %v1153, %v1159
      %v1164 = vadd.f32 %v1154, %v1160
      %v1165 = vadd.f32 %v1155, %v1161
      %v1166 = vadd.f32 %v1156, %v1162
      %s1167 = sld [smem:[#allocation6 + $0xa]]
      %v1168 = vstv %s1167
      %v1169 = vadd.f32 %v1163, %v1168
      %v1170 = vadd.f32 %v1164, %v1168
      %v1171 = vadd.f32 %v1165, %v1168
      %v1172 = vadd.f32 %v1166, %v1168
      %s1173 = sadd.s32 %s58, 8320
      %s1174 = scalar_lea.vmem [#allocation9], %s1173
      %1175 = vst [vmem:[%s1174] sm:$0xff] %v1169
      %1176 = vst [vmem:[%s1174 + $0x8] sm:$0xff] %v1170
      %1177 = vst [vmem:[%s1174 + $0x10] sm:$0xff] %v1171
      %1178 = vst [vmem:[%s1174 + $0x18] sm:$0x3] %v1172
      %s1179 = sld [smem:[#allocation2 + $0x580]]
      %v1180 = vstv %s1179
      %v1181 = vmul.f32 %v60, %v1180
      %v1182 = vmul.f32 %v61, %v1180
      %v1183 = vmul.f32 %v62, %v1180
      %v1184 = vmul.f32 %v63, %v1180
      %s1185 = sld [smem:[#allocation2 + $0x581]]
      %v1186 = vstv %s1185
      %v1187 = vmul.f32 %v64, %v1186
      %v1188 = vmul.f32 %v65, %v1186
      %v1189 = vmul.f32 %v66, %v1186
      %v1190 = vmul.f32 %v67, %v1186
      %v1191 = vadd.f32 %v1181, %v1187
      %v1192 = vadd.f32 %v1182, %v1188
      %v1193 = vadd.f32 %v1183, %v1189
      %v1194 = vadd.f32 %v1184, %v1190
      %s1195 = sld [smem:[#allocation2 + $0x582]]
      %v1196 = vstv %s1195
      %v1197 = vmul.f32 %v68, %v1196
      %v1198 = vmul.f32 %v69, %v1196
      %v1199 = vmul.f32 %v70, %v1196
      %v1200 = vmul.f32 %v71, %v1196
      %v1201 = vadd.f32 %v1191, %v1197
      %v1202 = vadd.f32 %v1192, %v1198
      %v1203 = vadd.f32 %v1193, %v1199
      %v1204 = vadd.f32 %v1194, %v1200
      %s1205 = sld [smem:[#allocation2 + $0x583]]
      %v1206 = vstv %s1205
      %v1207 = vmul.f32 %v75, %v1206
      %v1208 = vmul.f32 %v76, %v1206
      %v1209 = vmul.f32 %v77, %v1206
      %v1210 = vmul.f32 %v78, %v1206
      %v1211 = vadd.f32 %v1201, %v1207
      %v1212 = vadd.f32 %v1202, %v1208
      %v1213 = vadd.f32 %v1203, %v1209
      %v1214 = vadd.f32 %v1204, %v1210
      %s1215 = sld [smem:[#allocation2 + $0x584]]
      %v1216 = vstv %s1215
      %v1217 = vmul.f32 %v79, %v1216
      %v1218 = vmul.f32 %v80, %v1216
      %v1219 = vmul.f32 %v81, %v1216
      %v1220 = vmul.f32 %v82, %v1216
      %v1221 = vadd.f32 %v1211, %v1217
      %v1222 = vadd.f32 %v1212, %v1218
      %v1223 = vadd.f32 %v1213, %v1219
      %v1224 = vadd.f32 %v1214, %v1220
      %s1225 = sld [smem:[#allocation2 + $0x585]]
      %v1226 = vstv %s1225
      %v1227 = vmul.f32 %v83, %v1226
      %v1228 = vmul.f32 %v84, %v1226
      %v1229 = vmul.f32 %v85, %v1226
      %v1230 = vmul.f32 %v86, %v1226
      %v1231 = vadd.f32 %v1221, %v1227
      %v1232 = vadd.f32 %v1222, %v1228
      %v1233 = vadd.f32 %v1223, %v1229
      %v1234 = vadd.f32 %v1224, %v1230
      %s1235 = sld [smem:[#allocation2 + $0x586]]
      %v1236 = vstv %s1235
      %v1237 = vmul.f32 %v90, %v1236
      %v1238 = vmul.f32 %v91, %v1236
      %v1239 = vmul.f32 %v92, %v1236
      %v1240 = vmul.f32 %v93, %v1236
      %v1241 = vadd.f32 %v1231, %v1237
      %v1242 = vadd.f32 %v1232, %v1238
      %v1243 = vadd.f32 %v1233, %v1239
      %v1244 = vadd.f32 %v1234, %v1240
      %s1245 = sld [smem:[#allocation2 + $0x587]]
      %v1246 = vstv %s1245
      %v1247 = vmul.f32 %v94, %v1246
      %v1248 = vmul.f32 %v95, %v1246
      %v1249 = vmul.f32 %v96, %v1246
      %v1250 = vmul.f32 %v97, %v1246
      %v1251 = vadd.f32 %v1241, %v1247
      %v1252 = vadd.f32 %v1242, %v1248
      %v1253 = vadd.f32 %v1243, %v1249
      %v1254 = vadd.f32 %v1244, %v1250
      %s1255 = sld [smem:[#allocation2 + $0x588]]
      %v1256 = vstv %s1255
      %v1257 = vmul.f32 %v98, %v1256
      %v1258 = vmul.f32 %v99, %v1256
      %v1259 = vmul.f32 %v100, %v1256
      %v1260 = vmul.f32 %v101, %v1256
      %v1261 = vadd.f32 %v1251, %v1257
      %v1262 = vadd.f32 %v1252, %v1258
      %v1263 = vadd.f32 %v1253, %v1259
      %v1264 = vadd.f32 %v1254, %v1260
      %s1265 = sld [smem:[#allocation6 + $0xb]]
      %v1266 = vstv %s1265
      %v1267 = vadd.f32 %v1261, %v1266
      %v1268 = vadd.f32 %v1262, %v1266
      %v1269 = vadd.f32 %v1263, %v1266
      %v1270 = vadd.f32 %v1264, %v1266
      %s1271 = sadd.s32 %s58, 9152
      %s1272 = scalar_lea.vmem [#allocation9], %s1271
      %1273 = vst [vmem:[%s1272] sm:$0xff] %v1267
      %1274 = vst [vmem:[%s1272 + $0x8] sm:$0xff] %v1268
      %1275 = vst [vmem:[%s1272 + $0x10] sm:$0xff] %v1269
      %1276 = vst [vmem:[%s1272 + $0x18] sm:$0x3] %v1270
    $region30: #{tpu_custom_call.1} parent=1 // loop_footer
      %s57 = sadd.s32 1, %s53
    $region31: #{tpu_custom_call.1} parent=1 // loop_footer_branch
      %52 = sbr.rel target = $region27
    $region32: #{tpu_custom_call.1} parent=1 // loop_exit
      _
    // Predicated region
    $region33: #{tpu_custom_call.1} parent=1 // pred_check
      _
    $region34: #{tpu_custom_call.1} parent=1 // pred_check_branch
      %1278 = sbr.rel (0) target = $region36
    $region35: #{tpu_custom_call.1} parent=1 // pred_region
      %s1280 = ssub.s32 159744, 159744
      %1281 = vsyncadd [#allocation4], %s1280
      %s1282 = sshll.u32 [#allocation9], 4
      %s1283 = int_to_ptr.vmem [resolvable:$true] %s1282
      %1288 = dma.vmem_to_hbm [thread:$0]  %s1283, 159744, %s3, [#allocation4], 128, 128, 8
    $region36: #{tpu_custom_call.1} parent=1 // pred_fallthru
      _
    // Predicated region
    $region37: #{tpu_custom_call.1} parent=1 // pred_check
      _
    $region38: #{tpu_custom_call.1} parent=1 // pred_check_branch
      %1290 = sbr.rel (0) target = $region40
    $region39: #{tpu_custom_call.1} parent=1 // pred_region
      %1291 = dma.done [#allocation4], 159744
    $region40: #{tpu_custom_call.1} parent=1 // pred_fallthru
      _
    %1292 = vsyncpa [#allocation3], 1
    %1293 = vsyncpa [#allocation4], 1
    %1294 = vsyncpa [#allocation5], 1
    %1295 = vsyncpa [#allocation7], 1

</llo_original>
